<compile_context>
chip_gen: v7x
topology: tpu7x:2x2x1
jax: 0.10.0
libtpu: 0.0.40
codegen_flags: <defaults>
</compile_context>

<pallas_src>
import functools

import jax
import jax.numpy as jnp
from jax import lax
from jax.experimental import pallas as pl
from jax.experimental.pallas import tpu as pltpu


# ---------------------------------------------------------------------------
# Pallas kernel: cost volume for one (image, channel-chunk) grid step
# ---------------------------------------------------------------------------
def _corr_kernel(x1_ref, x2_ref, o_ref, *, D, W, H, n_ctiles):
    # x1_ref: (1, TC, W,  H )   query features            (channel chunk)
    # x2_ref: (1, TC, Wp, Hp)   zero-padded target feats  (channel chunk)
    # o_ref : (1, D*D, W, H )   cost volume for this image (resident over chunks)
    c = pl.program_id(1)

    if n_ctiles > 1:
        @pl.when(c == 0)
        def _init():
            o_ref[...] = jnp.zeros_like(o_ref)

    x1b = x1_ref[0].astype(jnp.float32)     # (TC, W, H)  hoisted once per chunk
    x2v = x2_ref.at[0]                      # ref view (TC, Wp, Hp), no load yet
    ov = o_ref.at[0]                        # ref view (D*D, W, H)

    def dy_body(dy, carry):
        # One dynamic sublane-offset load covers all D dx-shifts for this dy.
        rows = x2v[:, pl.ds(dy, W), :].astype(jnp.float32)      # (TC, W, Hp)
        for dx in range(D):                                     # static unroll (D=21)
            win = rows[:, :, dx:dx + H]                         # (TC, W, H) lane slice
            part = jnp.sum(x1b * win, axis=0)                   # (W, H) f32, VPU only
            p = dy * D + dx
            if n_ctiles > 1:
                ov[p] = ov[p] + part                            # VMEM-resident RMW
            else:
                ov[p] = part
        return carry

    lax.fori_loop(0, D, dy_body, 0)


# ---------------------------------------------------------------------------
# Wrapper: padding (glue) + pallas_call
# ---------------------------------------------------------------------------
def _round_up(x, m):
    return (x + m - 1) // m * m


@functools.partial(jax.jit, static_argnames=("d", "s1", "c_tile"))
def correlation(x1, x2, *, d=20, s1=1, c_tile=32):
    """Pallas equivalent of CorrelationModule(k, d, s1, s2).forward(x1, x2).

    k and s2 do not affect the reference forward pass, so they are not parameters here.
    """
    if s1 != 1:
        raise NotImplementedError("CorrelationModule forward is only valid for s1 == 1")
    if d % 2 != 0:
        raise NotImplementedError("d must be even so pad = d // 2 recovers full size")
    assert x1.shape == x2.shape and x1.ndim == 4
    B, C, W, H = x1.shape
    D = d + s1                      # displacement-window side (21 for the defaults)
    pad = d // 2

    # Zero-pad x2 (cheap glue; avoids in-kernel boundary masking).
    x2p = jnp.pad(x2, ((0, 0), (0, 0), (pad, pad), (pad, pad)))
    Wp, Hp = W + 2 * pad, H + 2 * pad

    # Channel chunk: largest divisor of C not exceeding c_tile. Bounds per-chunk
    # register pressure (hoisted x1 chunk + padded row window) without blowing up the
    # number of reduction grid steps / accumulator RMW passes.
    TC = max(1, min(C, c_tile))
    while C % TC:
        TC -= 1
    KC = C // TC

    out_dtype = jnp.float32                 # reference allocates float32 output
    itemsize = jnp.dtype(x1.dtype).itemsize

    # VMEM budget from padded (8,128)-tiled block sizes, double buffered, + headroom.
    def tiled_bytes(lead, sub, lane, nbytes):
        return lead * _round_up(sub, 8) * _round_up(lane, 128) * nbytes

    in_bytes = tiled_bytes(TC, W, H, itemsize) + tiled_bytes(TC, Wp, Hp, itemsize)
    out_bytes = tiled_bytes(D * D, W, H, 4)
    vmem_limit = int(min(64 << 20,
                         max(32 << 20, 2 * in_bytes + 2 * out_bytes + (8 << 20))))
    # TODO(synk): for very large spatial extents add a W-row grid axis with a halo'd
    # x2 row window instead of holding the full (D*D, W, H) cost-volume block in VMEM.

    kernel = functools.partial(_corr_kernel, D=D, W=W, H=H, n_ctiles=KC)

    return pl.pallas_call(
        kernel,
        out_shape=jax.ShapeDtypeStruct((B, D * D, W, H), out_dtype),
        grid_spec=pltpu.PrefetchScalarGridSpec(
            num_scalar_prefetch=0,
            grid=(B, KC),                                  # channel reduction innermost
            in_specs=[
                pl.BlockSpec((1, TC, W, H), lambda b, c: (b, c, 0, 0)),
                pl.BlockSpec((1, TC, Wp, Hp), lambda b, c: (b, c, 0, 0)),
            ],
            out_specs=pl.BlockSpec((1, D * D, W, H), lambda b, c: (b, 0, 0, 0)),
        ),
        compiler_params=pltpu.CompilerParams(
            dimension_semantics=("parallel", "arbitrary"),
            vmem_limit_bytes=vmem_limit,
        ),
    )(x1, x2p)


# ---------------------------------------------------------------------------
# Pure-JAX reference (direct transcription of the cost-volume formula)
# ---------------------------------------------------------------------------
def correlation_ref(x1, x2, *, d=20, s1=1):
    pad = d // 2
    D = d + s1
    B, C, W, H = x1.shape
    x2p = jnp.pad(x2, ((0, 0), (0, 0), (pad, pad), (pad, pad)))
    planes = []
    for dy in range(D):
        for dx in range(D):
            win = lax.slice(x2p, (0, 0, dy, dx), (B, C, dy + W, dx + H))
            planes.append(jnp.sum(x1 * win, axis=1))
    return jnp.stack(planes, axis=1)


if __name__ == "__main__":
    key = jax.random.PRNGKey(0)
    k1, k2 = jax.random.split(key)

    B, C, W, H = 2, 4, 16, 16           # small shapes; module defaults d=20, s1=1
    x1 = jax.random.normal(k1, (B, C, W, H), jnp.float32)
    x2 = jax.random.normal(k2, (B, C, W, H), jnp.float32)

    out = correlation(x1, x2, d=20, s1=1)
    out = jax.block_until_ready(out)
    assert out.shape == (B, 21 * 21, W, H), out.shape

    ref = jax.block_until_ready(correlation_ref(x1, x2, d=20, s1=1))
    max_err = float(jnp.max(jnp.abs(out - ref)))
    assert jnp.allclose(out, ref, rtol=1e-4, atol=1e-4), max_err

    print("KERNEL_OK")
</pallas_src>

<mosaic_0001>
module attributes {stable_mosaic.version = 11 : i64} {
  func.func @_corr_kernel(%arg0: i32, %arg1: i32, %arg2: memref<1x4x16x16xf32, #tpu.memory_space<vmem>>, %arg3: memref<1x4x36x36xf32, #tpu.memory_space<vmem>>, %arg4: memref<1x441x16x16xf32, #tpu.memory_space<vmem>>) attributes {dimension_semantics = [#tpu.dimension_semantics<parallel>, #tpu.dimension_semantics<arbitrary>], iteration_bounds = array<i64: 2, 1>, scalar_prefetch = 0 : i64, scratch_operands = 0 : i64, tpu.core_type = #tpu.core_type<tc>, window_params = [{transform_indices = @transform_0, window_bounds = array<i64: 1, 4, 16, 16>}, {transform_indices = @transform_1, window_bounds = array<i64: 1, 4, 36, 36>}, {transform_indices = @transform_2, window_bounds = array<i64: 1, 441, 16, 16>}]} {
    %c0 = arith.constant 0 : index
    %c0_0 = arith.constant 0 : index
    %c0_1 = arith.constant 0 : index
    %c0_2 = arith.constant 0 : index
    %0 = vector.load %arg2[%c0, %c0_0, %c0_1, %c0_2] : memref<1x4x16x16xf32, #tpu.memory_space<vmem>>, vector<1x4x16x16xf32>
    %1 = vector.shape_cast %0 : vector<1x4x16x16xf32> to vector<4x16x16xf32>
    %c0_i32 = arith.constant 0 : i32
    %c0_i32_3 = arith.constant 0 : i32
    %c0_i32_4 = arith.constant 0 : i32
    %c21_i32 = arith.constant 21 : i32
    %2 = arith.addi %c0_i32_4, %c21_i32 : i32
    %c1_i32 = arith.constant 1 : i32
    scf.for %arg5 = %c0_i32_4 to %2 step %c1_i32  : i32 {
      %c0_i32_6 = arith.constant 0 : i32
      %c0_i32_7 = arith.constant 0 : i32
      %c0_i32_8 = arith.constant 0 : i32
      %3 = tpu.memref_slice %arg3[%c0_i32, %c0_i32_6, %c0_i32_7, %c0_i32_8] : memref<1x4x36x36xf32, #tpu.memory_space<vmem>> -> memref<1x4x36x36xf32, #tpu.memory_space<vmem>>
      %4 = tpu.memref_squeeze %3 : memref<1x4x36x36xf32, #tpu.memory_space<vmem>> -> memref<4x36x36xf32, #tpu.memory_space<vmem>>
      %c0_9 = arith.constant 0 : index
      %5 = arith.index_cast %arg5 : i32 to index
      %c0_10 = arith.constant 0 : index
      %6 = vector.load %4[%c0_9, %5, %c0_10] : memref<4x36x36xf32, #tpu.memory_space<vmem>>, vector<4x16x36xf32>
      %7 = vector.extract_strided_slice %6 {offsets = [0, 0, 0], sizes = [4, 16, 16], strides = [1, 1, 1]} : vector<4x16x36xf32> to vector<4x16x16xf32>
      %8 = arith.mulf %1, %7 : vector<4x16x16xf32>
      %cst = arith.constant dense<0.000000e+00> : vector<16x16xf32>
      %9 = vector.multi_reduction <add>, %8, %cst [0] : vector<4x16x16xf32> to vector<16x16xf32>
      %c21_i32_11 = arith.constant 21 : i32
      %10 = arith.muli %arg5, %c21_i32_11 : i32
      %c0_i32_12 = arith.constant 0 : i32
      %11 = arith.addi %10, %c0_i32_12 : i32
      %c0_i32_13 = arith.constant 0 : i32
      %c0_i32_14 = arith.constant 0 : i32
      %c0_i32_15 = arith.constant 0 : i32
      %12 = tpu.memref_slice %arg4[%c0_i32_3, %c0_i32_13, %c0_i32_14, %c0_i32_15] : memref<1x441x16x16xf32, #tpu.memory_space<vmem>> -> memref<1x441x16x16xf32, #tpu.memory_space<vmem>>
      %13 = tpu.memref_squeeze %12 : memref<1x441x16x16xf32, #tpu.memory_space<vmem>> -> memref<441x16x16xf32, #tpu.memory_space<vmem>>
      %14 = arith.index_cast %11 : i32 to index
      %c0_16 = arith.constant 0 : index
      %c0_17 = arith.constant 0 : index
      %15 = vector.load %13[%14, %c0_16, %c0_17] : memref<441x16x16xf32, #tpu.memory_space<vmem>>, vector<1x16x16xf32>
      %16 = vector.shape_cast %15 : vector<1x16x16xf32> to vector<16x16xf32>
      %17 = vector.shape_cast %9 : vector<16x16xf32> to vector<1x16x16xf32>
      tpu.vector_store %13[%14, %c0_16, %c0_17], %17 {strides = array<i32>} : memref<441x16x16xf32, #tpu.memory_space<vmem>>, vector<1x16x16xf32>,
      %18 = vector.extract_strided_slice %6 {offsets = [0, 0, 1], sizes = [4, 16, 16], strides = [1, 1, 1]} : vector<4x16x36xf32> to vector<4x16x16xf32>
      %19 = arith.mulf %1, %18 : vector<4x16x16xf32>
      %cst_18 = arith.constant dense<0.000000e+00> : vector<16x16xf32>
      %20 = vector.multi_reduction <add>, %19, %cst_18 [0] : vector<4x16x16xf32> to vector<16x16xf32>
      %c21_i32_19 = arith.constant 21 : i32
      %21 = arith.muli %arg5, %c21_i32_19 : i32
      %c1_i32_20 = arith.constant 1 : i32
      %22 = arith.addi %21, %c1_i32_20 : i32
      %c0_i32_21 = arith.constant 0 : i32
      %c0_i32_22 = arith.constant 0 : i32
      %c0_i32_23 = arith.constant 0 : i32
      %23 = tpu.memref_slice %arg4[%c0_i32_3, %c0_i32_21, %c0_i32_22, %c0_i32_23] : memref<1x441x16x16xf32, #tpu.memory_space<vmem>> -> memref<1x441x16x16xf32, #tpu.memory_space<vmem>>
      %24 = tpu.memref_squeeze %23 : memref<1x441x16x16xf32, #tpu.memory_space<vmem>> -> memref<441x16x16xf32, #tpu.memory_space<vmem>>
      %25 = arith.index_cast %22 : i32 to index
      %c0_24 = arith.constant 0 : index
      %c0_25 = arith.constant 0 : index
      %26 = vector.load %24[%25, %c0_24, %c0_25] : memref<441x16x16xf32, #tpu.memory_space<vmem>>, vector<1x16x16xf32>
      %27 = vector.shape_cast %26 : vector<1x16x16xf32> to vector<16x16xf32>
      %28 = vector.shape_cast %20 : vector<16x16xf32> to vector<1x16x16xf32>
      tpu.vector_store %24[%25, %c0_24, %c0_25], %28 {strides = array<i32>} : memref<441x16x16xf32, #tpu.memory_space<vmem>>, vector<1x16x16xf32>,
      %29 = vector.extract_strided_slice %6 {offsets = [0, 0, 2], sizes = [4, 16, 16], strides = [1, 1, 1]} : vector<4x16x36xf32> to vector<4x16x16xf32>
      %30 = arith.mulf %1, %29 : vector<4x16x16xf32>
      %cst_26 = arith.constant dense<0.000000e+00> : vector<16x16xf32>
      %31 = vector.multi_reduction <add>, %30, %cst_26 [0] : vector<4x16x16xf32> to vector<16x16xf32>
      %c21_i32_27 = arith.constant 21 : i32
      %32 = arith.muli %arg5, %c21_i32_27 : i32
      %c2_i32 = arith.constant 2 : i32
      %33 = arith.addi %32, %c2_i32 : i32
      %c0_i32_28 = arith.constant 0 : i32
      %c0_i32_29 = arith.constant 0 : i32
      %c0_i32_30 = arith.constant 0 : i32
      %34 = tpu.memref_slice %arg4[%c0_i32_3, %c0_i32_28, %c0_i32_29, %c0_i32_30] : memref<1x441x16x16xf32, #tpu.memory_space<vmem>> -> memref<1x441x16x16xf32, #tpu.memory_space<vmem>>
      %35 = tpu.memref_squeeze %34 : memref<1x441x16x16xf32, #tpu.memory_space<vmem>> -> memref<441x16x16xf32, #tpu.memory_space<vmem>>
      %36 = arith.index_cast %33 : i32 to index
      %c0_31 = arith.constant 0 : index
      %c0_32 = arith.constant 0 : index
      %37 = vector.load %35[%36, %c0_31, %c0_32] : memref<441x16x16xf32, #tpu.memory_space<vmem>>, vector<1x16x16xf32>
      %38 = vector.shape_cast %37 : vector<1x16x16xf32> to vector<16x16xf32>
      %39 = vector.shape_cast %31 : vector<16x16xf32> to vector<1x16x16xf32>
      tpu.vector_store %35[%36, %c0_31, %c0_32], %39 {strides = array<i32>} : memref<441x16x16xf32, #tpu.memory_space<vmem>>, vector<1x16x16xf32>,
      %40 = vector.extract_strided_slice %6 {offsets = [0, 0, 3], sizes = [4, 16, 16], strides = [1, 1, 1]} : vector<4x16x36xf32> to vector<4x16x16xf32>
      %41 = arith.mulf %1, %40 : vector<4x16x16xf32>
      %cst_33 = arith.constant dense<0.000000e+00> : vector<16x16xf32>
      %42 = vector.multi_reduction <add>, %41, %cst_33 [0] : vector<4x16x16xf32> to vector<16x16xf32>
      %c21_i32_34 = arith.constant 21 : i32
      %43 = arith.muli %arg5, %c21_i32_34 : i32
      %c3_i32 = arith.constant 3 : i32
      %44 = arith.addi %43, %c3_i32 : i32
      %c0_i32_35 = arith.constant 0 : i32
      %c0_i32_36 = arith.constant 0 : i32
      %c0_i32_37 = arith.constant 0 : i32
      %45 = tpu.memref_slice %arg4[%c0_i32_3, %c0_i32_35, %c0_i32_36, %c0_i32_37] : memref<1x441x16x16xf32, #tpu.memory_space<vmem>> -> memref<1x441x16x16xf32, #tpu.memory_space<vmem>>
      %46 = tpu.memref_squeeze %45 : memref<1x441x16x16xf32, #tpu.memory_space<vmem>> -> memref<441x16x16xf32, #tpu.memory_space<vmem>>
      %47 = arith.index_cast %44 : i32 to index
      %c0_38 = arith.constant 0 : index
      %c0_39 = arith.constant 0 : index
      %48 = vector.load %46[%47, %c0_38, %c0_39] : memref<441x16x16xf32, #tpu.memory_space<vmem>>, vector<1x16x16xf32>
      %49 = vector.shape_cast %48 : vector<1x16x16xf32> to vector<16x16xf32>
      %50 = vector.shape_cast %42 : vector<16x16xf32> to vector<1x16x16xf32>
      tpu.vector_store %46[%47, %c0_38, %c0_39], %50 {strides = array<i32>} : memref<441x16x16xf32, #tpu.memory_space<vmem>>, vector<1x16x16xf32>,
      %51 = vector.extract_strided_slice %6 {offsets = [0, 0, 4], sizes = [4, 16, 16], strides = [1, 1, 1]} : vector<4x16x36xf32> to vector<4x16x16xf32>
      %52 = arith.mulf %1, %51 : vector<4x16x16xf32>
      %cst_40 = arith.constant dense<0.000000e+00> : vector<16x16xf32>
      %53 = vector.multi_reduction <add>, %52, %cst_40 [0] : vector<4x16x16xf32> to vector<16x16xf32>
      %c21_i32_41 = arith.constant 21 : i32
      %54 = arith.muli %arg5, %c21_i32_41 : i32
      %c4_i32 = arith.constant 4 : i32
      %55 = arith.addi %54, %c4_i32 : i32
      %c0_i32_42 = arith.constant 0 : i32
      %c0_i32_43 = arith.constant 0 : i32
      %c0_i32_44 = arith.constant 0 : i32
      %56 = tpu.memref_slice %arg4[%c0_i32_3, %c0_i32_42, %c0_i32_43, %c0_i32_44] : memref<1x441x16x16xf32, #tpu.memory_space<vmem>> -> memref<1x441x16x16xf32, #tpu.memory_space<vmem>>
      %57 = tpu.memref_squeeze %56 : memref<1x441x16x16xf32, #tpu.memory_space<vmem>> -> memref<441x16x16xf32, #tpu.memory_space<vmem>>
      %58 = arith.index_cast %55 : i32 to index
      %c0_45 = arith.constant 0 : index
      %c0_46 = arith.constant 0 : index
      %59 = vector.load %57[%58, %c0_45, %c0_46] : memref<441x16x16xf32, #tpu.memory_space<vmem>>, vector<1x16x16xf32>
      %60 = vector.shape_cast %59 : vector<1x16x16xf32> to vector<16x16xf32>
      %61 = vector.shape_cast %53 : vector<16x16xf32> to vector<1x16x16xf32>
      tpu.vector_store %57[%58, %c0_45, %c0_46], %61 {strides = array<i32>} : memref<441x16x16xf32, #tpu.memory_space<vmem>>, vector<1x16x16xf32>,
      %62 = vector.extract_strided_slice %6 {offsets = [0, 0, 5], sizes = [4, 16, 16], strides = [1, 1, 1]} : vector<4x16x36xf32> to vector<4x16x16xf32>
      %63 = arith.mulf %1, %62 : vector<4x16x16xf32>
      %cst_47 = arith.constant dense<0.000000e+00> : vector<16x16xf32>
      %64 = vector.multi_reduction <add>, %63, %cst_47 [0] : vector<4x16x16xf32> to vector<16x16xf32>
      %c21_i32_48 = arith.constant 21 : i32
      %65 = arith.muli %arg5, %c21_i32_48 : i32
      %c5_i32 = arith.constant 5 : i32
      %66 = arith.addi %65, %c5_i32 : i32
      %c0_i32_49 = arith.constant 0 : i32
      %c0_i32_50 = arith.constant 0 : i32
      %c0_i32_51 = arith.constant 0 : i32
      %67 = tpu.memref_slice %arg4[%c0_i32_3, %c0_i32_49, %c0_i32_50, %c0_i32_51] : memref<1x441x16x16xf32, #tpu.memory_space<vmem>> -> memref<1x441x16x16xf32, #tpu.memory_space<vmem>>
      %68 = tpu.memref_squeeze %67 : memref<1x441x16x16xf32, #tpu.memory_space<vmem>> -> memref<441x16x16xf32, #tpu.memory_space<vmem>>
      %69 = arith.index_cast %66 : i32 to index
      %c0_52 = arith.constant 0 : index
      %c0_53 = arith.constant 0 : index
      %70 = vector.load %68[%69, %c0_52, %c0_53] : memref<441x16x16xf32, #tpu.memory_space<vmem>>, vector<1x16x16xf32>
      %71 = vector.shape_cast %70 : vector<1x16x16xf32> to vector<16x16xf32>
      %72 = vector.shape_cast %64 : vector<16x16xf32> to vector<1x16x16xf32>
      tpu.vector_store %68[%69, %c0_52, %c0_53], %72 {strides = array<i32>} : memref<441x16x16xf32, #tpu.memory_space<vmem>>, vector<1x16x16xf32>,
      %73 = vector.extract_strided_slice %6 {offsets = [0, 0, 6], sizes = [4, 16, 16], strides = [1, 1, 1]} : vector<4x16x36xf32> to vector<4x16x16xf32>
      %74 = arith.mulf %1, %73 : vector<4x16x16xf32>
      %cst_54 = arith.constant dense<0.000000e+00> : vector<16x16xf32>
      %75 = vector.multi_reduction <add>, %74, %cst_54 [0] : vector<4x16x16xf32> to vector<16x16xf32>
      %c21_i32_55 = arith.constant 21 : i32
      %76 = arith.muli %arg5, %c21_i32_55 : i32
      %c6_i32 = arith.constant 6 : i32
      %77 = arith.addi %76, %c6_i32 : i32
      %c0_i32_56 = arith.constant 0 : i32
      %c0_i32_57 = arith.constant 0 : i32
      %c0_i32_58 = arith.constant 0 : i32
      %78 = tpu.memref_slice %arg4[%c0_i32_3, %c0_i32_56, %c0_i32_57, %c0_i32_58] : memref<1x441x16x16xf32, #tpu.memory_space<vmem>> -> memref<1x441x16x16xf32, #tpu.memory_space<vmem>>
      %79 = tpu.memref_squeeze %78 : memref<1x441x16x16xf32, #tpu.memory_space<vmem>> -> memref<441x16x16xf32, #tpu.memory_space<vmem>>
      %80 = arith.index_cast %77 : i32 to index
      %c0_59 = arith.constant 0 : index
      %c0_60 = arith.constant 0 : index
      %81 = vector.load %79[%80, %c0_59, %c0_60] : memref<441x16x16xf32, #tpu.memory_space<vmem>>, vector<1x16x16xf32>
      %82 = vector.shape_cast %81 : vector<1x16x16xf32> to vector<16x16xf32>
      %83 = vector.shape_cast %75 : vector<16x16xf32> to vector<1x16x16xf32>
      tpu.vector_store %79[%80, %c0_59, %c0_60], %83 {strides = array<i32>} : memref<441x16x16xf32, #tpu.memory_space<vmem>>, vector<1x16x16xf32>,
      %84 = vector.extract_strided_slice %6 {offsets = [0, 0, 7], sizes = [4, 16, 16], strides = [1, 1, 1]} : vector<4x16x36xf32> to vector<4x16x16xf32>
      %85 = arith.mulf %1, %84 : vector<4x16x16xf32>
      %cst_61 = arith.constant dense<0.000000e+00> : vector<16x16xf32>
      %86 = vector.multi_reduction <add>, %85, %cst_61 [0] : vector<4x16x16xf32> to vector<16x16xf32>
      %c21_i32_62 = arith.constant 21 : i32
      %87 = arith.muli %arg5, %c21_i32_62 : i32
      %c7_i32 = arith.constant 7 : i32
      %88 = arith.addi %87, %c7_i32 : i32
      %c0_i32_63 = arith.constant 0 : i32
      %c0_i32_64 = arith.constant 0 : i32
      %c0_i32_65 = arith.constant 0 : i32
      %89 = tpu.memref_slice %arg4[%c0_i32_3, %c0_i32_63, %c0_i32_64, %c0_i32_65] : memref<1x441x16x16xf32, #tpu.memory_space<vmem>> -> memref<1x441x16x16xf32, #tpu.memory_space<vmem>>
      %90 = tpu.memref_squeeze %89 : memref<1x441x16x16xf32, #tpu.memory_space<vmem>> -> memref<441x16x16xf32, #tpu.memory_space<vmem>>
      %91 = arith.index_cast %88 : i32 to index
      %c0_66 = arith.constant 0 : index
      %c0_67 = arith.constant 0 : index
      %92 = vector.load %90[%91, %c0_66, %c0_67] : memref<441x16x16xf32, #tpu.memory_space<vmem>>, vector<1x16x16xf32>
      %93 = vector.shape_cast %92 : vector<1x16x16xf32> to vector<16x16xf32>
      %94 = vector.shape_cast %86 : vector<16x16xf32> to vector<1x16x16xf32>
      tpu.vector_store %90[%91, %c0_66, %c0_67], %94 {strides = array<i32>} : memref<441x16x16xf32, #tpu.memory_space<vmem>>, vector<1x16x16xf32>,
      %95 = vector.extract_strided_slice %6 {offsets = [0, 0, 8], sizes = [4, 16, 16], strides = [1, 1, 1]} : vector<4x16x36xf32> to vector<4x16x16xf32>
      %96 = arith.mulf %1, %95 : vector<4x16x16xf32>
      %cst_68 = arith.constant dense<0.000000e+00> : vector<16x16xf32>
      %97 = vector.multi_reduction <add>, %96, %cst_68 [0] : vector<4x16x16xf32> to vector<16x16xf32>
      %c21_i32_69 = arith.constant 21 : i32
      %98 = arith.muli %arg5, %c21_i32_69 : i32
      %c8_i32 = arith.constant 8 : i32
      %99 = arith.addi %98, %c8_i32 : i32
      %c0_i32_70 = arith.constant 0 : i32
      %c0_i32_71 = arith.constant 0 : i32
      %c0_i32_72 = arith.constant 0 : i32
      %100 = tpu.memref_slice %arg4[%c0_i32_3, %c0_i32_70, %c0_i32_71, %c0_i32_72] : memref<1x441x16x16xf32, #tpu.memory_space<vmem>> -> memref<1x441x16x16xf32, #tpu.memory_space<vmem>>
      %101 = tpu.memref_squeeze %100 : memref<1x441x16x16xf32, #tpu.memory_space<vmem>> -> memref<441x16x16xf32, #tpu.memory_space<vmem>>
      %102 = arith.index_cast %99 : i32 to index
      %c0_73 = arith.constant 0 : index
      %c0_74 = arith.constant 0 : index
      %103 = vector.load %101[%102, %c0_73, %c0_74] : memref<441x16x16xf32, #tpu.memory_space<vmem>>, vector<1x16x16xf32>
      %104 = vector.shape_cast %103 : vector<1x16x16xf32> to vector<16x16xf32>
      %105 = vector.shape_cast %97 : vector<16x16xf32> to vector<1x16x16xf32>
      tpu.vector_store %101[%102, %c0_73, %c0_74], %105 {strides = array<i32>} : memref<441x16x16xf32, #tpu.memory_space<vmem>>, vector<1x16x16xf32>,
      %106 = vector.extract_strided_slice %6 {offsets = [0, 0, 9], sizes = [4, 16, 16], strides = [1, 1, 1]} : vector<4x16x36xf32> to vector<4x16x16xf32>
      %107 = arith.mulf %1, %106 : vector<4x16x16xf32>
      %cst_75 = arith.constant dense<0.000000e+00> : vector<16x16xf32>
      %108 = vector.multi_reduction <add>, %107, %cst_75 [0] : vector<4x16x16xf32> to vector<16x16xf32>
      %c21_i32_76 = arith.constant 21 : i32
      %109 = arith.muli %arg5, %c21_i32_76 : i32
      %c9_i32 = arith.constant 9 : i32
      %110 = arith.addi %109, %c9_i32 : i32
      %c0_i32_77 = arith.constant 0 : i32
      %c0_i32_78 = arith.constant 0 : i32
      %c0_i32_79 = arith.constant 0 : i32
      %111 = tpu.memref_slice %arg4[%c0_i32_3, %c0_i32_77, %c0_i32_78, %c0_i32_79] : memref<1x441x16x16xf32, #tpu.memory_space<vmem>> -> memref<1x441x16x16xf32, #tpu.memory_space<vmem>>
      %112 = tpu.memref_squeeze %111 : memref<1x441x16x16xf32, #tpu.memory_space<vmem>> -> memref<441x16x16xf32, #tpu.memory_space<vmem>>
      %113 = arith.index_cast %110 : i32 to index
      %c0_80 = arith.constant 0 : index
      %c0_81 = arith.constant 0 : index
      %114 = vector.load %112[%113, %c0_80, %c0_81] : memref<441x16x16xf32, #tpu.memory_space<vmem>>, vector<1x16x16xf32>
      %115 = vector.shape_cast %114 : vector<1x16x16xf32> to vector<16x16xf32>
      %116 = vector.shape_cast %108 : vector<16x16xf32> to vector<1x16x16xf32>
      tpu.vector_store %112[%113, %c0_80, %c0_81], %116 {strides = array<i32>} : memref<441x16x16xf32, #tpu.memory_space<vmem>>, vector<1x16x16xf32>,
      %117 = vector.extract_strided_slice %6 {offsets = [0, 0, 10], sizes = [4, 16, 16], strides = [1, 1, 1]} : vector<4x16x36xf32> to vector<4x16x16xf32>
      %118 = arith.mulf %1, %117 : vector<4x16x16xf32>
      %cst_82 = arith.constant dense<0.000000e+00> : vector<16x16xf32>
      %119 = vector.multi_reduction <add>, %118, %cst_82 [0] : vector<4x16x16xf32> to vector<16x16xf32>
      %c21_i32_83 = arith.constant 21 : i32
      %120 = arith.muli %arg5, %c21_i32_83 : i32
      %c10_i32 = arith.constant 10 : i32
      %121 = arith.addi %120, %c10_i32 : i32
      %c0_i32_84 = arith.constant 0 : i32
      %c0_i32_85 = arith.constant 0 : i32
      %c0_i32_86 = arith.constant 0 : i32
      %122 = tpu.memref_slice %arg4[%c0_i32_3, %c0_i32_84, %c0_i32_85, %c0_i32_86] : memref<1x441x16x16xf32, #tpu.memory_space<vmem>> -> memref<1x441x16x16xf32, #tpu.memory_space<vmem>>
      %123 = tpu.memref_squeeze %122 : memref<1x441x16x16xf32, #tpu.memory_space<vmem>> -> memref<441x16x16xf32, #tpu.memory_space<vmem>>
      %124 = arith.index_cast %121 : i32 to index
      %c0_87 = arith.constant 0 : index
      %c0_88 = arith.constant 0 : index
      %125 = vector.load %123[%124, %c0_87, %c0_88] : memref<441x16x16xf32, #tpu.memory_space<vmem>>, vector<1x16x16xf32>
      %126 = vector.shape_cast %125 : vector<1x16x16xf32> to vector<16x16xf32>
      %127 = vector.shape_cast %119 : vector<16x16xf32> to vector<1x16x16xf32>
      tpu.vector_store %123[%124, %c0_87, %c0_88], %127 {strides = array<i32>} : memref<441x16x16xf32, #tpu.memory_space<vmem>>, vector<1x16x16xf32>,
      %128 = vector.extract_strided_slice %6 {offsets = [0, 0, 11], sizes = [4, 16, 16], strides = [1, 1, 1]} : vector<4x16x36xf32> to vector<4x16x16xf32>
      %129 = arith.mulf %1, %128 : vector<4x16x16xf32>
      %cst_89 = arith.constant dense<0.000000e+00> : vector<16x16xf32>
      %130 = vector.multi_reduction <add>, %129, %cst_89 [0] : vector<4x16x16xf32> to vector<16x16xf32>
      %c21_i32_90 = arith.constant 21 : i32
      %131 = arith.muli %arg5, %c21_i32_90 : i32
      %c11_i32 = arith.constant 11 : i32
      %132 = arith.addi %131, %c11_i32 : i32
      %c0_i32_91 = arith.constant 0 : i32
      %c0_i32_92 = arith.constant 0 : i32
      %c0_i32_93 = arith.constant 0 : i32
      %133 = tpu.memref_slice %arg4[%c0_i32_3, %c0_i32_91, %c0_i32_92, %c0_i32_93] : memref<1x441x16x16xf32, #tpu.memory_space<vmem>> -> memref<1x441x16x16xf32, #tpu.memory_space<vmem>>
      %134 = tpu.memref_squeeze %133 : memref<1x441x16x16xf32, #tpu.memory_space<vmem>> -> memref<441x16x16xf32, #tpu.memory_space<vmem>>
      %135 = arith.index_cast %132 : i32 to index
      %c0_94 = arith.constant 0 : index
      %c0_95 = arith.constant 0 : index
      %136 = vector.load %134[%135, %c0_94, %c0_95] : memref<441x16x16xf32, #tpu.memory_space<vmem>>, vector<1x16x16xf32>
      %137 = vector.shape_cast %136 : vector<1x16x16xf32> to vector<16x16xf32>
      %138 = vector.shape_cast %130 : vector<16x16xf32> to vector<1x16x16xf32>
      tpu.vector_store %134[%135, %c0_94, %c0_95], %138 {strides = array<i32>} : memref<441x16x16xf32, #tpu.memory_space<vmem>>, vector<1x16x16xf32>,
      %139 = vector.extract_strided_slice %6 {offsets = [0, 0, 12], sizes = [4, 16, 16], strides = [1, 1, 1]} : vector<4x16x36xf32> to vector<4x16x16xf32>
      %140 = arith.mulf %1, %139 : vector<4x16x16xf32>
      %cst_96 = arith.constant dense<0.000000e+00> : vector<16x16xf32>
      %141 = vector.multi_reduction <add>, %140, %cst_96 [0] : vector<4x16x16xf32> to vector<16x16xf32>
      %c21_i32_97 = arith.constant 21 : i32
      %142 = arith.muli %arg5, %c21_i32_97 : i32
      %c12_i32 = arith.constant 12 : i32
      %143 = arith.addi %142, %c12_i32 : i32
      %c0_i32_98 = arith.constant 0 : i32
      %c0_i32_99 = arith.constant 0 : i32
      %c0_i32_100 = arith.constant 0 : i32
      %144 = tpu.memref_slice %arg4[%c0_i32_3, %c0_i32_98, %c0_i32_99, %c0_i32_100] : memref<1x441x16x16xf32, #tpu.memory_space<vmem>> -> memref<1x441x16x16xf32, #tpu.memory_space<vmem>>
      %145 = tpu.memref_squeeze %144 : memref<1x441x16x16xf32, #tpu.memory_space<vmem>> -> memref<441x16x16xf32, #tpu.memory_space<vmem>>
      %146 = arith.index_cast %143 : i32 to index
      %c0_101 = arith.constant 0 : index
      %c0_102 = arith.constant 0 : index
      %147 = vector.load %145[%146, %c0_101, %c0_102] : memref<441x16x16xf32, #tpu.memory_space<vmem>>, vector<1x16x16xf32>
      %148 = vector.shape_cast %147 : vector<1x16x16xf32> to vector<16x16xf32>
      %149 = vector.shape_cast %141 : vector<16x16xf32> to vector<1x16x16xf32>
      tpu.vector_store %145[%146, %c0_101, %c0_102], %149 {strides = array<i32>} : memref<441x16x16xf32, #tpu.memory_space<vmem>>, vector<1x16x16xf32>,
      %150 = vector.extract_strided_slice %6 {offsets = [0, 0, 13], sizes = [4, 16, 16], strides = [1, 1, 1]} : vector<4x16x36xf32> to vector<4x16x16xf32>
      %151 = arith.mulf %1, %150 : vector<4x16x16xf32>
      %cst_103 = arith.constant dense<0.000000e+00> : vector<16x16xf32>
      %152 = vector.multi_reduction <add>, %151, %cst_103 [0] : vector<4x16x16xf32> to vector<16x16xf32>
      %c21_i32_104 = arith.constant 21 : i32
      %153 = arith.muli %arg5, %c21_i32_104 : i32
      %c13_i32 = arith.constant 13 : i32
      %154 = arith.addi %153, %c13_i32 : i32
      %c0_i32_105 = arith.constant 0 : i32
      %c0_i32_106 = arith.constant 0 : i32
      %c0_i32_107 = arith.constant 0 : i32
      %155 = tpu.memref_slice %arg4[%c0_i32_3, %c0_i32_105, %c0_i32_106, %c0_i32_107] : memref<1x441x16x16xf32, #tpu.memory_space<vmem>> -> memref<1x441x16x16xf32, #tpu.memory_space<vmem>>
      %156 = tpu.memref_squeeze %155 : memref<1x441x16x16xf32, #tpu.memory_space<vmem>> -> memref<441x16x16xf32, #tpu.memory_space<vmem>>
      %157 = arith.index_cast %154 : i32 to index
      %c0_108 = arith.constant 0 : index
      %c0_109 = arith.constant 0 : index
      %158 = vector.load %156[%157, %c0_108, %c0_109] : memref<441x16x16xf32, #tpu.memory_space<vmem>>, vector<1x16x16xf32>
      %159 = vector.shape_cast %158 : vector<1x16x16xf32> to vector<16x16xf32>
      %160 = vector.shape_cast %152 : vector<16x16xf32> to vector<1x16x16xf32>
      tpu.vector_store %156[%157, %c0_108, %c0_109], %160 {strides = array<i32>} : memref<441x16x16xf32, #tpu.memory_space<vmem>>, vector<1x16x16xf32>,
      %161 = vector.extract_strided_slice %6 {offsets = [0, 0, 14], sizes = [4, 16, 16], strides = [1, 1, 1]} : vector<4x16x36xf32> to vector<4x16x16xf32>
      %162 = arith.mulf %1, %161 : vector<4x16x16xf32>
      %cst_110 = arith.constant dense<0.000000e+00> : vector<16x16xf32>
      %163 = vector.multi_reduction <add>, %162, %cst_110 [0] : vector<4x16x16xf32> to vector<16x16xf32>
      %c21_i32_111 = arith.constant 21 : i32
      %164 = arith.muli %arg5, %c21_i32_111 : i32
      %c14_i32 = arith.constant 14 : i32
      %165 = arith.addi %164, %c14_i32 : i32
      %c0_i32_112 = arith.constant 0 : i32
      %c0_i32_113 = arith.constant 0 : i32
      %c0_i32_114 = arith.constant 0 : i32
      %166 = tpu.memref_slice %arg4[%c0_i32_3, %c0_i32_112, %c0_i32_113, %c0_i32_114] : memref<1x441x16x16xf32, #tpu.memory_space<vmem>> -> memref<1x441x16x16xf32, #tpu.memory_space<vmem>>
      %167 = tpu.memref_squeeze %166 : memref<1x441x16x16xf32, #tpu.memory_space<vmem>> -> memref<441x16x16xf32, #tpu.memory_space<vmem>>
      %168 = arith.index_cast %165 : i32 to index
      %c0_115 = arith.constant 0 : index
      %c0_116 = arith.constant 0 : index
      %169 = vector.load %167[%168, %c0_115, %c0_116] : memref<441x16x16xf32, #tpu.memory_space<vmem>>, vector<1x16x16xf32>
      %170 = vector.shape_cast %169 : vector<1x16x16xf32> to vector<16x16xf32>
      %171 = vector.shape_cast %163 : vector<16x16xf32> to vector<1x16x16xf32>
      tpu.vector_store %167[%168, %c0_115, %c0_116], %171 {strides = array<i32>} : memref<441x16x16xf32, #tpu.memory_space<vmem>>, vector<1x16x16xf32>,
      %172 = vector.extract_strided_slice %6 {offsets = [0, 0, 15], sizes = [4, 16, 16], strides = [1, 1, 1]} : vector<4x16x36xf32> to vector<4x16x16xf32>
      %173 = arith.mulf %1, %172 : vector<4x16x16xf32>
      %cst_117 = arith.constant dense<0.000000e+00> : vector<16x16xf32>
      %174 = vector.multi_reduction <add>, %173, %cst_117 [0] : vector<4x16x16xf32> to vector<16x16xf32>
      %c21_i32_118 = arith.constant 21 : i32
      %175 = arith.muli %arg5, %c21_i32_118 : i32
      %c15_i32 = arith.constant 15 : i32
      %176 = arith.addi %175, %c15_i32 : i32
      %c0_i32_119 = arith.constant 0 : i32
      %c0_i32_120 = arith.constant 0 : i32
      %c0_i32_121 = arith.constant 0 : i32
      %177 = tpu.memref_slice %arg4[%c0_i32_3, %c0_i32_119, %c0_i32_120, %c0_i32_121] : memref<1x441x16x16xf32, #tpu.memory_space<vmem>> -> memref<1x441x16x16xf32, #tpu.memory_space<vmem>>
      %178 = tpu.memref_squeeze %177 : memref<1x441x16x16xf32, #tpu.memory_space<vmem>> -> memref<441x16x16xf32, #tpu.memory_space<vmem>>
      %179 = arith.index_cast %176 : i32 to index
      %c0_122 = arith.constant 0 : index
      %c0_123 = arith.constant 0 : index
      %180 = vector.load %178[%179, %c0_122, %c0_123] : memref<441x16x16xf32, #tpu.memory_space<vmem>>, vector<1x16x16xf32>
      %181 = vector.shape_cast %180 : vector<1x16x16xf32> to vector<16x16xf32>
      %182 = vector.shape_cast %174 : vector<16x16xf32> to vector<1x16x16xf32>
      tpu.vector_store %178[%179, %c0_122, %c0_123], %182 {strides = array<i32>} : memref<441x16x16xf32, #tpu.memory_space<vmem>>, vector<1x16x16xf32>,
      %183 = vector.extract_strided_slice %6 {offsets = [0, 0, 16], sizes = [4, 16, 16], strides = [1, 1, 1]} : vector<4x16x36xf32> to vector<4x16x16xf32>
      %184 = arith.mulf %1, %183 : vector<4x16x16xf32>
      %cst_124 = arith.constant dense<0.000000e+00> : vector<16x16xf32>
      %185 = vector.multi_reduction <add>, %184, %cst_124 [0] : vector<4x16x16xf32> to vector<16x16xf32>
      %c21_i32_125 = arith.constant 21 : i32
      %186 = arith.muli %arg5, %c21_i32_125 : i32
      %c16_i32 = arith.constant 16 : i32
      %187 = arith.addi %186, %c16_i32 : i32
      %c0_i32_126 = arith.constant 0 : i32
      %c0_i32_127 = arith.constant 0 : i32
      %c0_i32_128 = arith.constant 0 : i32
      %188 = tpu.memref_slice %arg4[%c0_i32_3, %c0_i32_126, %c0_i32_127, %c0_i32_128] : memref<1x441x16x16xf32, #tpu.memory_space<vmem>> -> memref<1x441x16x16xf32, #tpu.memory_space<vmem>>
      %189 = tpu.memref_squeeze %188 : memref<1x441x16x16xf32, #tpu.memory_space<vmem>> -> memref<441x16x16xf32, #tpu.memory_space<vmem>>
      %190 = arith.index_cast %187 : i32 to index
      %c0_129 = arith.constant 0 : index
      %c0_130 = arith.constant 0 : index
      %191 = vector.load %189[%190, %c0_129, %c0_130] : memref<441x16x16xf32, #tpu.memory_space<vmem>>, vector<1x16x16xf32>
      %192 = vector.shape_cast %191 : vector<1x16x16xf32> to vector<16x16xf32>
      %193 = vector.shape_cast %185 : vector<16x16xf32> to vector<1x16x16xf32>
      tpu.vector_store %189[%190, %c0_129, %c0_130], %193 {strides = array<i32>} : memref<441x16x16xf32, #tpu.memory_space<vmem>>, vector<1x16x16xf32>,
      %194 = vector.extract_strided_slice %6 {offsets = [0, 0, 17], sizes = [4, 16, 16], strides = [1, 1, 1]} : vector<4x16x36xf32> to vector<4x16x16xf32>
      %195 = arith.mulf %1, %194 : vector<4x16x16xf32>
      %cst_131 = arith.constant dense<0.000000e+00> : vector<16x16xf32>
      %196 = vector.multi_reduction <add>, %195, %cst_131 [0] : vector<4x16x16xf32> to vector<16x16xf32>
      %c21_i32_132 = arith.constant 21 : i32
      %197 = arith.muli %arg5, %c21_i32_132 : i32
      %c17_i32 = arith.constant 17 : i32
      %198 = arith.addi %197, %c17_i32 : i32
      %c0_i32_133 = arith.constant 0 : i32
      %c0_i32_134 = arith.constant 0 : i32
      %c0_i32_135 = arith.constant 0 : i32
      %199 = tpu.memref_slice %arg4[%c0_i32_3, %c0_i32_133, %c0_i32_134, %c0_i32_135] : memref<1x441x16x16xf32, #tpu.memory_space<vmem>> -> memref<1x441x16x16xf32, #tpu.memory_space<vmem>>
      %200 = tpu.memref_squeeze %199 : memref<1x441x16x16xf32, #tpu.memory_space<vmem>> -> memref<441x16x16xf32, #tpu.memory_space<vmem>>
      %201 = arith.index_cast %198 : i32 to index
      %c0_136 = arith.constant 0 : index
      %c0_137 = arith.constant 0 : index
      %202 = vector.load %200[%201, %c0_136, %c0_137] : memref<441x16x16xf32, #tpu.memory_space<vmem>>, vector<1x16x16xf32>
      %203 = vector.shape_cast %202 : vector<1x16x16xf32> to vector<16x16xf32>
      %204 = vector.shape_cast %196 : vector<16x16xf32> to vector<1x16x16xf32>
      tpu.vector_store %200[%201, %c0_136, %c0_137], %204 {strides = array<i32>} : memref<441x16x16xf32, #tpu.memory_space<vmem>>, vector<1x16x16xf32>,
      %205 = vector.extract_strided_slice %6 {offsets = [0, 0, 18], sizes = [4, 16, 16], strides = [1, 1, 1]} : vector<4x16x36xf32> to vector<4x16x16xf32>
      %206 = arith.mulf %1, %205 : vector<4x16x16xf32>
      %cst_138 = arith.constant dense<0.000000e+00> : vector<16x16xf32>
      %207 = vector.multi_reduction <add>, %206, %cst_138 [0] : vector<4x16x16xf32> to vector<16x16xf32>
      %c21_i32_139 = arith.constant 21 : i32
      %208 = arith.muli %arg5, %c21_i32_139 : i32
      %c18_i32 = arith.constant 18 : i32
      %209 = arith.addi %208, %c18_i32 : i32
      %c0_i32_140 = arith.constant 0 : i32
      %c0_i32_141 = arith.constant 0 : i32
      %c0_i32_142 = arith.constant 0 : i32
      %210 = tpu.memref_slice %arg4[%c0_i32_3, %c0_i32_140, %c0_i32_141, %c0_i32_142] : memref<1x441x16x16xf32, #tpu.memory_space<vmem>> -> memref<1x441x16x16xf32, #tpu.memory_space<vmem>>
      %211 = tpu.memref_squeeze %210 : memref<1x441x16x16xf32, #tpu.memory_space<vmem>> -> memref<441x16x16xf32, #tpu.memory_space<vmem>>
      %212 = arith.index_cast %209 : i32 to index
      %c0_143 = arith.constant 0 : index
      %c0_144 = arith.constant 0 : index
      %213 = vector.load %211[%212, %c0_143, %c0_144] : memref<441x16x16xf32, #tpu.memory_space<vmem>>, vector<1x16x16xf32>
      %214 = vector.shape_cast %213 : vector<1x16x16xf32> to vector<16x16xf32>
      %215 = vector.shape_cast %207 : vector<16x16xf32> to vector<1x16x16xf32>
      tpu.vector_store %211[%212, %c0_143, %c0_144], %215 {strides = array<i32>} : memref<441x16x16xf32, #tpu.memory_space<vmem>>, vector<1x16x16xf32>,
      %216 = vector.extract_strided_slice %6 {offsets = [0, 0, 19], sizes = [4, 16, 16], strides = [1, 1, 1]} : vector<4x16x36xf32> to vector<4x16x16xf32>
      %217 = arith.mulf %1, %216 : vector<4x16x16xf32>
      %cst_145 = arith.constant dense<0.000000e+00> : vector<16x16xf32>
      %218 = vector.multi_reduction <add>, %217, %cst_145 [0] : vector<4x16x16xf32> to vector<16x16xf32>
      %c21_i32_146 = arith.constant 21 : i32
      %219 = arith.muli %arg5, %c21_i32_146 : i32
      %c19_i32 = arith.constant 19 : i32
      %220 = arith.addi %219, %c19_i32 : i32
      %c0_i32_147 = arith.constant 0 : i32
      %c0_i32_148 = arith.constant 0 : i32
      %c0_i32_149 = arith.constant 0 : i32
      %221 = tpu.memref_slice %arg4[%c0_i32_3, %c0_i32_147, %c0_i32_148, %c0_i32_149] : memref<1x441x16x16xf32, #tpu.memory_space<vmem>> -> memref<1x441x16x16xf32, #tpu.memory_space<vmem>>
      %222 = tpu.memref_squeeze %221 : memref<1x441x16x16xf32, #tpu.memory_space<vmem>> -> memref<441x16x16xf32, #tpu.memory_space<vmem>>
      %223 = arith.index_cast %220 : i32 to index
      %c0_150 = arith.constant 0 : index
      %c0_151 = arith.constant 0 : index
      %224 = vector.load %222[%223, %c0_150, %c0_151] : memref<441x16x16xf32, #tpu.memory_space<vmem>>, vector<1x16x16xf32>
      %225 = vector.shape_cast %224 : vector<1x16x16xf32> to vector<16x16xf32>
      %226 = vector.shape_cast %218 : vector<16x16xf32> to vector<1x16x16xf32>
      tpu.vector_store %222[%223, %c0_150, %c0_151], %226 {strides = array<i32>} : memref<441x16x16xf32, #tpu.memory_space<vmem>>, vector<1x16x16xf32>,
      %227 = vector.extract_strided_slice %6 {offsets = [0, 0, 20], sizes = [4, 16, 16], strides = [1, 1, 1]} : vector<4x16x36xf32> to vector<4x16x16xf32>
      %228 = arith.mulf %1, %227 : vector<4x16x16xf32>
      %cst_152 = arith.constant dense<0.000000e+00> : vector<16x16xf32>
      %229 = vector.multi_reduction <add>, %228, %cst_152 [0] : vector<4x16x16xf32> to vector<16x16xf32>
      %c21_i32_153 = arith.constant 21 : i32
      %230 = arith.muli %arg5, %c21_i32_153 : i32
      %c20_i32 = arith.constant 20 : i32
      %231 = arith.addi %230, %c20_i32 : i32
      %c0_i32_154 = arith.constant 0 : i32
      %c0_i32_155 = arith.constant 0 : i32
      %c0_i32_156 = arith.constant 0 : i32
      %232 = tpu.memref_slice %arg4[%c0_i32_3, %c0_i32_154, %c0_i32_155, %c0_i32_156] : memref<1x441x16x16xf32, #tpu.memory_space<vmem>> -> memref<1x441x16x16xf32, #tpu.memory_space<vmem>>
      %233 = tpu.memref_squeeze %232 : memref<1x441x16x16xf32, #tpu.memory_space<vmem>> -> memref<441x16x16xf32, #tpu.memory_space<vmem>>
      %234 = arith.index_cast %231 : i32 to index
      %c0_157 = arith.constant 0 : index
      %c0_158 = arith.constant 0 : index
      %235 = vector.load %233[%234, %c0_157, %c0_158] : memref<441x16x16xf32, #tpu.memory_space<vmem>>, vector<1x16x16xf32>
      %236 = vector.shape_cast %235 : vector<1x16x16xf32> to vector<16x16xf32>
      %237 = vector.shape_cast %229 : vector<16x16xf32> to vector<1x16x16xf32>
      tpu.vector_store %233[%234, %c0_157, %c0_158], %237 {strides = array<i32>} : memref<441x16x16xf32, #tpu.memory_space<vmem>>, vector<1x16x16xf32>,
    }
    %c21_i32_5 = arith.constant 21 : i32
    return
  }
  func.func @transform_0(%arg0: i32, %arg1: i32) -> (i32, i32, i32, i32) {
    %c0_i32 = arith.constant 0 : i32
    %c0_i32_0 = arith.constant 0 : i32
    %c0_i32_1 = arith.constant 0 : i32
    return %arg0, %arg1, %c0_i32, %c0_i32_0 : i32, i32, i32, i32
  }
  func.func @transform_1(%arg0: i32, %arg1: i32) -> (i32, i32, i32, i32) {
    %c0_i32 = arith.constant 0 : i32
    %c0_i32_0 = arith.constant 0 : i32
    %c0_i32_1 = arith.constant 0 : i32
    return %arg0, %arg1, %c0_i32, %c0_i32_0 : i32, i32, i32, i32
  }
  func.func @transform_2(%arg0: i32, %arg1: i32) -> (i32, i32, i32, i32) {
    %c0_i32 = arith.constant 0 : i32
    %c0_i32_0 = arith.constant 0 : i32
    %c0_i32_1 = arith.constant 0 : i32
    %c0_i32_2 = arith.constant 0 : i32
    return %arg0, %c0_i32, %c0_i32_0, %c0_i32_1 : i32, i32, i32, i32
  }
}

</mosaic_0001>

<llo_original>
// kernel: correlation.1
$region0: #{correlation.1}
  #allocation0 [shape = 'u32[]', space=smem, size = 0x4, offset = 0x4, fixed_abs, tag = 'smem constant byte address 0x4 - core index']
  #allocation1 [shape = 'u32[144,128]{1,0:T(1,128)}', space=vmem, size = 0x12000, scoped, tag = 'internal scratch']
  %s0 = inlined_call_operand.hbm [shape: f32[2,4,16,16], index: 0, kind: input, shape index: {}]
  %s1 = inlined_call_operand.vmem [shape: f32[2,4,36,36], index: 1, kind: input, shape index: {}]
  %s2 = inlined_call_operand.vmem [shape: f32[2,441,16,16], index: 2, kind: output, shape index: {}]
  %s3 = sld [smem:[#allocation0]]
  $region52: #{correlation.1} parent=0
    _
  %s5 = ssub.s32 1, %s3
  %s6 = scalar_select 0, %s5, %s3
  $region1: #{correlation.1} parent=0
    #allocation2 [shape = 'u8[65536]{0}', space=vmem, size = 0x10000, scoped, tag = 'input window, operand 0']
    #allocation3 [shape = 's32[2]{0}', space=sflag, size = 0x8, scoped, tag = 'scoped memory for correlation.1']
    %7 = vsyncpa [#allocation3], 0
    %s8 = scalar_lea.sflag [#allocation3], 1
    %9 = vsyncpa %s8, 0
    loop: start=0, step=1, limit=4
    $region2: #{correlation.1} parent=1 // loop_pre_header
      _
    $region3: #{correlation.1} parent=1 // loop_header
      %s11 = sphi 0, %s15
      %p12 = scmp.ge.s32.totalorder %s11, 4
      %s18 = sphi 0, %s30
      %s19 = sphi 0, %s26
      %s20 = sphi 0, %s18
      %s21 = sphi 0, %s19
      %s22 = sphi 0, %s20
      %s23 = sphi 0, %s21
      %s35 = sphi 0, %s37
      %s38 = sphi 0, %s35
      %s39 = sphi 0, %s38
      %s55 = sphi 0, %s39
      %s63 = sphi 0, %s65
      %s66 = sphi 0, %s63
      %s67 = sphi 0, %s66
      %s83 = sphi 0, %s67
      %s89 = sphi 0, %s91
      %s92 = sphi 0, %s89
      %s93 = sphi 0, %s92
      %s109 = sphi 0, %s93
    $region4: #{correlation.1} parent=1 // loop_header_branch
      %14 = sbr.rel (%p12) target = $region8
    $region5: #{correlation.1} parent=1 // loop_body
      %s16 = ssub.s32 %s11, 1
      %s17 = ssub.s32 %s11, 2
      %s24 = sadd.s32 1, %s19
      %p25 = scmp.ge.s32.totalorder %s24, 1
      %s26 = scalar_select %p25, 0, %s24
      %s27 = sadd.s32 1, %s18
      %s28 = scalar_select %p25, %s27, %s18
      %p29 = scmp.ge.s32.totalorder %s28, 2
      %s30 = scalar_select %p29, 0, %s28
      %s31 = ssub.s32 %s18, %s30
      %s32 = ssub.s32 %s19, %s26
      %s33 = sor.u32 %s31, %s32
      %p34 = scmp.eq.s32.totalorder %s33, 0
      %s36 = sadd.s32 %s35, 1
      %s37 = scalar_select %p34, %s35, %s36
      %p40 = pneg %p34
      %p41 = scmp.eq.s32.totalorder %s11, 1
      %p42 = por %p40, %p41
      %p43 = scmp.ne.s32.totalorder %s35, %s38
      %p44 = scmp.eq.s32.totalorder %s11, 0
      %p45 = por %p43, %p44
      %p46 = scmp.ne.s32.totalorder %s35, %s38
      %p47 = scmp.eq.s32.totalorder %s16, 1
      %p48 = por %p46, %p47
      %p49 = scmp.ne.s32.totalorder %s38, %s39
      %p50 = scmp.eq.s32.totalorder %s16, 0
      %p51 = por %p49, %p50
      %p52 = scmp.ne.s32.totalorder %s38, %s39
      %p53 = scmp.eq.s32.totalorder %s17, 1
      %p54 = por %p52, %p53
      %p56 = scmp.ne.s32.totalorder %s39, %s55
      %p57 = scmp.eq.s32.totalorder %s17, 0
      %p58 = por %p56, %p57
      %s59 = ssub.s32 %s18, %s30
      %s60 = ssub.s32 %s19, %s26
      %s61 = sor.u32 %s59, %s60
      %p62 = scmp.eq.s32.totalorder %s61, 0
      %s64 = sadd.s32 %s63, 1
      %s65 = scalar_select %p62, %s63, %s64
      %p68 = pneg %p62
      %p69 = scmp.eq.s32.totalorder %s11, 1
      %p70 = por %p68, %p69
      %p71 = scmp.ne.s32.totalorder %s63, %s66
      %p72 = scmp.eq.s32.totalorder %s11, 0
      %p73 = por %p71, %p72
      %p74 = scmp.ne.s32.totalorder %s63, %s66
      %p75 = scmp.eq.s32.totalorder %s16, 1
      %p76 = por %p74, %p75
      %p77 = scmp.ne.s32.totalorder %s66, %s67
      %p78 = scmp.eq.s32.totalorder %s16, 0
      %p79 = por %p77, %p78
      %p80 = scmp.ne.s32.totalorder %s66, %s67
      %p81 = scmp.eq.s32.totalorder %s17, 1
      %p82 = por %p80, %p81
      %p84 = scmp.ne.s32.totalorder %s67, %s83
      %p85 = scmp.eq.s32.totalorder %s17, 0
      %p86 = por %p84, %p85
      %s87 = ssub.s32 %s18, %s30
      %p88 = scmp.eq.s32.totalorder %s87, 0
      %s90 = sadd.s32 %s89, 1
      %s91 = scalar_select %p88, %s89, %s90
      %p94 = pneg %p88
      %p95 = scmp.eq.s32.totalorder %s11, 1
      %p96 = por %p94, %p95
      %p97 = scmp.ne.s32.totalorder %s89, %s92
      %p98 = scmp.eq.s32.totalorder %s11, 0
      %p99 = por %p97, %p98
      %p100 = scmp.ne.s32.totalorder %s89, %s92
      %p101 = scmp.eq.s32.totalorder %s16, 1
      %p102 = por %p100, %p101
      %p103 = scmp.ne.s32.totalorder %s92, %s93
      %p104 = scmp.eq.s32.totalorder %s16, 0
      %p105 = por %p103, %p104
      %p106 = scmp.ne.s32.totalorder %s92, %s93
      %p107 = scmp.eq.s32.totalorder %s17, 1
      %p108 = por %p106, %p107
      %p110 = scmp.ne.s32.totalorder %s93, %s109
      %p111 = scmp.eq.s32.totalorder %s17, 0
      %p112 = por %p110, %p111
      %p113 = scmp.le.s32.totalorder 1, %s11
      %p114 = scmp.lt.s32.totalorder %s11, 3
      %p115 = pnand %p113, %p114
      %p116 = pneg %p115
      // Predicated region
      $region9: #{correlation.1} parent=5 // pred_check
        _
      $region10: #{correlation.1} parent=5 // pred_check_branch
        %118 = sbr.rel (%p115) target = $region12
      $region11: #{correlation.1} parent=5 // pred_region
        %s119 = ssub.s32 %s11, 1
      $region12: #{correlation.1} parent=5 // pred_fallthru
        _
      %p120 = scmp.lt.s32.totalorder %s11, 2
      // Predicated region
      $region13: #{correlation.1} parent=5 // pred_check
        %p121 = pneg %p120
      $region14: #{correlation.1} parent=5 // pred_check_branch
        %123 = sbr.rel (%p121) target = $region16
      $region15: #{correlation.1} parent=5 // pred_region
        // Predicated region
        $region17: #{correlation.1} parent=15 // pred_check
          %p124 = pneg %p45
        $region18: #{correlation.1} parent=15 // pred_check_branch
          %126 = sbr.rel (%p124) target = $region20
        $region19: #{correlation.1} parent=15 // pred_region
          %s127 = sand.u32 %s35, 1
          %s128 = scalar_lea.sflag [#allocation3], %s127
          %s129 = sand.u32 %s35, 1
          %s130 = smul.addr %s129, 64
          %s131 = scalar_lea.vmem [#allocation2], %s130
          %s132 = smul.u32 4, %s19
          %s134 = ssub.s32 1024, 1024
          %135 = vsyncadd %s128, %s134
          %s136 = smul.addr %s132, 2
          %s137 = smul.addr %s18, 8
          %s138 = sadd.s32 %s136, %s137
          %s139 = smul.addr %s138, 128
          %s140 = scalar_lea.hbm %s0, %s139
          %s141 = sshll.u32 %s131, 4
          %s142 = int_to_ptr.vmem [resolvable:$true] %s141
          %147 = dma.hbm_to_vmem [thread:$0]  %s140, 1024, %s142, %s128, 128, 128, 8
        $region20: #{correlation.1} parent=15 // pred_fallthru
          _
        // Predicated region
        $region21: #{correlation.1} parent=15 // pred_check
          %p148 = pneg %p73
        $region22: #{correlation.1} parent=15 // pred_check_branch
          %150 = sbr.rel (%p148) target = $region24
        $region23: #{correlation.1} parent=15 // pred_region
          %s151 = smul.u32 4, %s19
          %p152 = scmp.lt.s32.totalorder %s18, 1
          %s153 = scalar_select %p152, %s18, 1
          %p154 = scmp.lt.s32.totalorder %s151, 3
          %s155 = scalar_select %p154, %s151, 3
          %s156 = smul.addr %s155, 5
          %s157 = smul.addr %s153, 20
          %s158 = sadd.s32 %s156, %s157
          %s159 = smul.addr %s158, 8
          %s160 = scalar_lea.vmem %s1, %s159
          %s161 = smul.u32 4, %s19
        $region24: #{correlation.1} parent=15 // pred_fallthru
          _
      $region16: #{correlation.1} parent=5 // pred_fallthru
        _
      %p162 = scmp.le.s32.totalorder 1, %s11
      %p163 = scmp.lt.s32.totalorder %s11, 3
      %p164 = pnand %p162, %p163
      %p165 = pneg %p164
      // Predicated region
      $region25: #{correlation.1} parent=5 // pred_check
        _
      $region26: #{correlation.1} parent=5 // pred_check_branch
        %167 = sbr.rel (%p164) target = $region28
      $region27: #{correlation.1} parent=5 // pred_region
        %s168 = ssub.s32 %s11, 1
        %s169 = sand.u32 %s38, 1
        %s170 = scalar_lea.sflag [#allocation3], %s169
        %s171 = sand.u32 %s38, 1
        %s172 = smul.addr %s171, 64
        %s173 = scalar_lea.vmem [#allocation2], %s172
        // Predicated region
        $region29: #{correlation.1} parent=27 // pred_check
          %p174 = pneg %p51
        $region30: #{correlation.1} parent=27 // pred_check_branch
          %176 = sbr.rel (%p174) target = $region32
        $region31: #{correlation.1} parent=27 // pred_region
          %177 = dma.done %s170, 1024
        $region32: #{correlation.1} parent=27 // pred_fallthru
          _
        %s178 = sand.u32 %s38, 1
        %s179 = scalar_lea.sflag [#allocation3], %s178
        %s180 = sand.u32 %s38, 1
        %s181 = smul.addr %s180, 64
        %s182 = scalar_lea.vmem [#allocation2], %s181
        %p183 = pneg %p51
        %p184 = pneg %p48
        %s185 = smul.u32 4, %s21
        %p186 = scmp.lt.s32.totalorder %s20, 1
        %s187 = scalar_select %p186, %s20, 1
        %p188 = scmp.lt.s32.totalorder %s185, 3
        %s189 = scalar_select %p188, %s185, 3
        %s190 = smul.addr %s189, 5
        %s191 = smul.addr %s187, 20
        %s192 = sadd.s32 %s190, %s191
        %s193 = smul.addr %s192, 8
        %s194 = scalar_lea.vmem %s1, %s193
        %p195 = pneg %p79
        %p196 = pneg %p76
        %p197 = pneg %p105
        %p198 = pneg %p102
        %p199 = scmp.lt.s32.totalorder %s20, 1
        %s200 = scalar_select %p199, %s20, 1
        %s201 = smul.addr %s200, 882
        %s202 = smul.addr %s201, 8
        %s203 = scalar_lea.vmem %s2, %s202
        %s204 = smul.u32 4, %s21
        %s205 = smul.u32 4, %s21
        %p206 = scmp.lt.s32.totalorder %s20, 1
        %s207 = scalar_select %p206, %s20, 1
        %p208 = scmp.lt.s32.totalorder %s205, 3
        %s209 = scalar_select %p208, %s205, 3
        %s210 = smul.addr %s209, 5
        %s211 = smul.addr %s207, 20
        %s212 = sadd.s32 %s210, %s211
        %s213 = smul.addr %s212, 8
        %s214 = scalar_lea.vmem %s1, %s213
        %s215 = smul.u32 4, %s21
        %p216 = scmp.lt.s32.totalorder %s20, 1
        %s217 = scalar_select %p216, %s20, 1
        %s218 = smul.addr %s217, 882
        %s219 = smul.addr %s218, 8
        %s220 = scalar_lea.vmem %s2, %s219
        %v221 = vld [vmem:[%s173] sm:$0xff]
        %v222 = vld [vmem:[%s173 + $0x8] sm:$0xff]
        %v223 = vld [vmem:[%s173 + $0x10] sm:$0xff]
        %v224 = vld [vmem:[%s173 + $0x18] sm:$0xff]
        %v225 = vld [vmem:[%s173 + $0x20] sm:$0xff]
        %v226 = vld [vmem:[%s173 + $0x28] sm:$0xff]
        %v227 = vld [vmem:[%s173 + $0x30] sm:$0xff]
        %v228 = vld [vmem:[%s173 + $0x38] sm:$0xff]
        loop: start=0, step=1, limit=21
        $region33: #{correlation.1} parent=27 // loop_pre_header
          _
        $region34: #{correlation.1} parent=27 // loop_header
          %s230 = sphi 0, %s234
          %p231 = scmp.ge.s32.totalorder %s230, 21
        $region35: #{correlation.1} parent=27 // loop_header_branch
          %233 = sbr.rel (%p231) target = $region39
        $region36: #{correlation.1} parent=27 // loop_body
          %s235 = scalar_lea.vmem %s214, %s230
          %v236 = vld [vmem:[%s235] sm:$0xff]
          %v237 = vld [vmem:[%s235 + $0x8] sm:$0xff]
          %v238 = vld [vmem:[%s235 + $0x28] sm:$0xff]
          %v239 = vld [vmem:[%s235 + $0x30] sm:$0xff]
          %v240 = vld [vmem:[%s235 + $0x50] sm:$0xff]
          %v241 = vld [vmem:[%s235 + $0x58] sm:$0xff]
          %v242 = vld [vmem:[%s235 + $0x78] sm:$0xff]
          %v243 = vld [vmem:[%s235 + $0x80] sm:$0xff]
          %v244 = vmul.f32 %v221, %v236
          %v245 = vmul.f32 %v222, %v237
          %v246 = vmul.f32 %v223, %v238
          %v247 = vmul.f32 %v224, %v239
          %v248 = vmul.f32 %v225, %v240
          %v249 = vmul.f32 %v226, %v241
          %v250 = vmul.f32 %v227, %v242
          %v251 = vmul.f32 %v228, %v243
          %vm252 = vcmask 130048
          %v253 = vsel %vm252, %v244, 0.0
          %v254 = vsel %vm252, %v246, 0.0
          %v255 = vadd.f32 %v253, %v254
          %v256 = vsel %vm252, %v248, 0.0
          %v257 = vadd.f32 %v255, %v256
          %v258 = vsel %vm252, %v250, 0.0
          %v259 = vadd.f32 %v257, %v258
          %v260 = vsel %vm252, %v245, 0.0
          %v261 = vsel %vm252, %v247, 0.0
          %v262 = vadd.f32 %v260, %v261
          %v263 = vsel %vm252, %v249, 0.0
          %v264 = vadd.f32 %v262, %v263
          %v265 = vsel %vm252, %v251, 0.0
          %v266 = vadd.f32 %v264, %v265
          %s267 = smul.u32 %s230, 21
          %s268 = smul.u32 %s267, 16
          %s269 = scalar_lea.vmem %s220, %s268
          %270 = vst.msk [vmem:[%s269] sm:$0xff] %vm252, %v259
          %271 = vst.msk [vmem:[%s269 + $0x8] sm:$0xff] %vm252, %v266
          %280 = vrot.lane.b32.xlu0 %v236, 127
          %v281 = vpop.permute.xlu0 %280
          %282 = vrot.lane.b32.xlu0 %v237, 127
          %v283 = vpop.permute.xlu0 %282
          %284 = vrot.lane.b32.xlu0 %v238, 127
          %v285 = vpop.permute.xlu0 %284
          %286 = vrot.lane.b32.xlu0 %v239, 127
          %v287 = vpop.permute.xlu0 %286
          %288 = vrot.lane.b32.xlu0 %v240, 127
          %v289 = vpop.permute.xlu0 %288
          %290 = vrot.lane.b32.xlu0 %v241, 127
          %v291 = vpop.permute.xlu0 %290
          %292 = vrot.lane.b32.xlu0 %v242, 127
          %v293 = vpop.permute.xlu0 %292
          %294 = vrot.lane.b32.xlu0 %v243, 127
          %v295 = vpop.permute.xlu0 %294
          %v304 = vmul.f32 %v221, %v281
          %v305 = vmul.f32 %v222, %v283
          %v306 = vmul.f32 %v223, %v285
          %v307 = vmul.f32 %v224, %v287
          %v308 = vmul.f32 %v225, %v289
          %v309 = vmul.f32 %v226, %v291
          %v310 = vmul.f32 %v227, %v293
          %v311 = vmul.f32 %v228, %v295
          %v312 = vsel %vm252, %v304, 0.0
          %v313 = vsel %vm252, %v306, 0.0
          %v314 = vadd.f32 %v312, %v313
          %v315 = vsel %vm252, %v308, 0.0
          %v316 = vadd.f32 %v314, %v315
          %v317 = vsel %vm252, %v310, 0.0
          %v318 = vadd.f32 %v316, %v317
          %v319 = vsel %vm252, %v305, 0.0
          %v320 = vsel %vm252, %v307, 0.0
          %v321 = vadd.f32 %v319, %v320
          %v322 = vsel %vm252, %v309, 0.0
          %v323 = vadd.f32 %v321, %v322
          %v324 = vsel %vm252, %v311, 0.0
          %v325 = vadd.f32 %v323, %v324
          %s326 = sadd.s32 %s267, 1
          %s327 = smul.u32 %s326, 16
          %s328 = scalar_lea.vmem %s220, %s327
          %329 = vst.msk [vmem:[%s328] sm:$0xff] %vm252, %v318
          %330 = vst.msk [vmem:[%s328 + $0x8] sm:$0xff] %vm252, %v325
          %331 = vrot.lane.b32.xlu0 %v236, 126
          %v332 = vpop.permute.xlu0 %331
          %333 = vrot.lane.b32.xlu0 %v237, 126
          %v334 = vpop.permute.xlu0 %333
          %335 = vrot.lane.b32.xlu0 %v238, 126
          %v336 = vpop.permute.xlu0 %335
          %337 = vrot.lane.b32.xlu0 %v239, 126
          %v338 = vpop.permute.xlu0 %337
          %339 = vrot.lane.b32.xlu0 %v240, 126
          %v340 = vpop.permute.xlu0 %339
          %341 = vrot.lane.b32.xlu0 %v241, 126
          %v342 = vpop.permute.xlu0 %341
          %343 = vrot.lane.b32.xlu0 %v242, 126
          %v344 = vpop.permute.xlu0 %343
          %345 = vrot.lane.b32.xlu0 %v243, 126
          %v346 = vpop.permute.xlu0 %345
          %v355 = vmul.f32 %v221, %v332
          %v356 = vmul.f32 %v222, %v334
          %v357 = vmul.f32 %v223, %v336
          %v358 = vmul.f32 %v224, %v338
          %v359 = vmul.f32 %v225, %v340
          %v360 = vmul.f32 %v226, %v342
          %v361 = vmul.f32 %v227, %v344
          %v362 = vmul.f32 %v228, %v346
          %v363 = vsel %vm252, %v355, 0.0
          %v364 = vsel %vm252, %v357, 0.0
          %v365 = vadd.f32 %v363, %v364
          %v366 = vsel %vm252, %v359, 0.0
          %v367 = vadd.f32 %v365, %v366
          %v368 = vsel %vm252, %v361, 0.0
          %v369 = vadd.f32 %v367, %v368
          %v370 = vsel %vm252, %v356, 0.0
          %v371 = vsel %vm252, %v358, 0.0
          %v372 = vadd.f32 %v370, %v371
          %v373 = vsel %vm252, %v360, 0.0
          %v374 = vadd.f32 %v372, %v373
          %v375 = vsel %vm252, %v362, 0.0
          %v376 = vadd.f32 %v374, %v375
          %s377 = sadd.s32 %s267, 2
          %s378 = smul.u32 %s377, 16
          %s379 = scalar_lea.vmem %s220, %s378
          %380 = vst.msk [vmem:[%s379] sm:$0xff] %vm252, %v369
          %381 = vst.msk [vmem:[%s379 + $0x8] sm:$0xff] %vm252, %v376
          %382 = vrot.lane.b32.xlu0 %v236, 125
          %v383 = vpop.permute.xlu0 %382
          %384 = vrot.lane.b32.xlu0 %v237, 125
          %v385 = vpop.permute.xlu0 %384
          %386 = vrot.lane.b32.xlu0 %v238, 125
          %v387 = vpop.permute.xlu0 %386
          %388 = vrot.lane.b32.xlu0 %v239, 125
          %v389 = vpop.permute.xlu0 %388
          %390 = vrot.lane.b32.xlu0 %v240, 125
          %v391 = vpop.permute.xlu0 %390
          %392 = vrot.lane.b32.xlu0 %v241, 125
          %v393 = vpop.permute.xlu0 %392
          %394 = vrot.lane.b32.xlu0 %v242, 125
          %v395 = vpop.permute.xlu0 %394
          %396 = vrot.lane.b32.xlu0 %v243, 125
          %v397 = vpop.permute.xlu0 %396
          %v406 = vmul.f32 %v221, %v383
          %v407 = vmul.f32 %v222, %v385
          %v408 = vmul.f32 %v223, %v387
          %v409 = vmul.f32 %v224, %v389
          %v410 = vmul.f32 %v225, %v391
          %v411 = vmul.f32 %v226, %v393
          %v412 = vmul.f32 %v227, %v395
          %v413 = vmul.f32 %v228, %v397
          %v414 = vsel %vm252, %v406, 0.0
          %v415 = vsel %vm252, %v408, 0.0
          %v416 = vadd.f32 %v414, %v415
          %v417 = vsel %vm252, %v410, 0.0
          %v418 = vadd.f32 %v416, %v417
          %v419 = vsel %vm252, %v412, 0.0
          %v420 = vadd.f32 %v418, %v419
          %v421 = vsel %vm252, %v407, 0.0
          %v422 = vsel %vm252, %v409, 0.0
          %v423 = vadd.f32 %v421, %v422
          %v424 = vsel %vm252, %v411, 0.0
          %v425 = vadd.f32 %v423, %v424
          %v426 = vsel %vm252, %v413, 0.0
          %v427 = vadd.f32 %v425, %v426
          %s428 = sadd.s32 %s267, 3
          %s429 = smul.u32 %s428, 16
          %s430 = scalar_lea.vmem %s220, %s429
          %431 = vst.msk [vmem:[%s430] sm:$0xff] %vm252, %v420
          %432 = vst.msk [vmem:[%s430 + $0x8] sm:$0xff] %vm252, %v427
          %433 = vrot.lane.b32.xlu0 %v236, 124
          %v434 = vpop.permute.xlu0 %433
          %435 = vrot.lane.b32.xlu0 %v237, 124
          %v436 = vpop.permute.xlu0 %435
          %437 = vrot.lane.b32.xlu0 %v238, 124
          %v438 = vpop.permute.xlu0 %437
          %439 = vrot.lane.b32.xlu0 %v239, 124
          %v440 = vpop.permute.xlu0 %439
          %441 = vrot.lane.b32.xlu0 %v240, 124
          %v442 = vpop.permute.xlu0 %441
          %443 = vrot.lane.b32.xlu0 %v241, 124
          %v444 = vpop.permute.xlu0 %443
          %445 = vrot.lane.b32.xlu0 %v242, 124
          %v446 = vpop.permute.xlu0 %445
          %447 = vrot.lane.b32.xlu0 %v243, 124
          %v448 = vpop.permute.xlu0 %447
          %v457 = vmul.f32 %v221, %v434
          %v458 = vmul.f32 %v222, %v436
          %v459 = vmul.f32 %v223, %v438
          %v460 = vmul.f32 %v224, %v440
          %v461 = vmul.f32 %v225, %v442
          %v462 = vmul.f32 %v226, %v444
          %v463 = vmul.f32 %v227, %v446
          %v464 = vmul.f32 %v228, %v448
          %v465 = vsel %vm252, %v457, 0.0
          %v466 = vsel %vm252, %v459, 0.0
          %v467 = vadd.f32 %v465, %v466
          %v468 = vsel %vm252, %v461, 0.0
          %v469 = vadd.f32 %v467, %v468
          %v470 = vsel %vm252, %v463, 0.0
          %v471 = vadd.f32 %v469, %v470
          %v472 = vsel %vm252, %v458, 0.0
          %v473 = vsel %vm252, %v460, 0.0
          %v474 = vadd.f32 %v472, %v473
          %v475 = vsel %vm252, %v462, 0.0
          %v476 = vadd.f32 %v474, %v475
          %v477 = vsel %vm252, %v464, 0.0
          %v478 = vadd.f32 %v476, %v477
          %s479 = sadd.s32 %s267, 4
          %s480 = smul.u32 %s479, 16
          %s481 = scalar_lea.vmem %s220, %s480
          %482 = vst.msk [vmem:[%s481] sm:$0xff] %vm252, %v471
          %483 = vst.msk [vmem:[%s481 + $0x8] sm:$0xff] %vm252, %v478
          %484 = vrot.lane.b32.xlu0 %v236, 123
          %v485 = vpop.permute.xlu0 %484
          %486 = vrot.lane.b32.xlu0 %v237, 123
          %v487 = vpop.permute.xlu0 %486
          %488 = vrot.lane.b32.xlu0 %v238, 123
          %v489 = vpop.permute.xlu0 %488
          %490 = vrot.lane.b32.xlu0 %v239, 123
          %v491 = vpop.permute.xlu0 %490
          %492 = vrot.lane.b32.xlu0 %v240, 123
          %v493 = vpop.permute.xlu0 %492
          %494 = vrot.lane.b32.xlu0 %v241, 123
          %v495 = vpop.permute.xlu0 %494
          %496 = vrot.lane.b32.xlu0 %v242, 123
          %v497 = vpop.permute.xlu0 %496
          %498 = vrot.lane.b32.xlu0 %v243, 123
          %v499 = vpop.permute.xlu0 %498
          %v508 = vmul.f32 %v221, %v485
          %v509 = vmul.f32 %v222, %v487
          %v510 = vmul.f32 %v223, %v489
          %v511 = vmul.f32 %v224, %v491
          %v512 = vmul.f32 %v225, %v493
          %v513 = vmul.f32 %v226, %v495
          %v514 = vmul.f32 %v227, %v497
          %v515 = vmul.f32 %v228, %v499
          %v516 = vsel %vm252, %v508, 0.0
          %v517 = vsel %vm252, %v510, 0.0
          %v518 = vadd.f32 %v516, %v517
          %v519 = vsel %vm252, %v512, 0.0
          %v520 = vadd.f32 %v518, %v519
          %v521 = vsel %vm252, %v514, 0.0
          %v522 = vadd.f32 %v520, %v521
          %v523 = vsel %vm252, %v509, 0.0
          %v524 = vsel %vm252, %v511, 0.0
          %v525 = vadd.f32 %v523, %v524
          %v526 = vsel %vm252, %v513, 0.0
          %v527 = vadd.f32 %v525, %v526
          %v528 = vsel %vm252, %v515, 0.0
          %v529 = vadd.f32 %v527, %v528
          %s530 = sadd.s32 %s267, 5
          %s531 = smul.u32 %s530, 16
          %s532 = scalar_lea.vmem %s220, %s531
          %533 = vst.msk [vmem:[%s532] sm:$0xff] %vm252, %v522
          %534 = vst.msk [vmem:[%s532 + $0x8] sm:$0xff] %vm252, %v529
          %535 = vrot.lane.b32.xlu0 %v236, 122
          %v536 = vpop.permute.xlu0 %535
          %537 = vrot.lane.b32.xlu0 %v237, 122
          %v538 = vpop.permute.xlu0 %537
          %539 = vrot.lane.b32.xlu0 %v238, 122
          %v540 = vpop.permute.xlu0 %539
          %541 = vrot.lane.b32.xlu0 %v239, 122
          %v542 = vpop.permute.xlu0 %541
          %543 = vrot.lane.b32.xlu0 %v240, 122
          %v544 = vpop.permute.xlu0 %543
          %545 = vrot.lane.b32.xlu0 %v241, 122
          %v546 = vpop.permute.xlu0 %545
          %547 = vrot.lane.b32.xlu0 %v242, 122
          %v548 = vpop.permute.xlu0 %547
          %549 = vrot.lane.b32.xlu0 %v243, 122
          %v550 = vpop.permute.xlu0 %549
          %v559 = vmul.f32 %v221, %v536
          %v560 = vmul.f32 %v222, %v538
          %v561 = vmul.f32 %v223, %v540
          %v562 = vmul.f32 %v224, %v542
          %v563 = vmul.f32 %v225, %v544
          %v564 = vmul.f32 %v226, %v546
          %v565 = vmul.f32 %v227, %v548
          %v566 = vmul.f32 %v228, %v550
          %v567 = vsel %vm252, %v559, 0.0
          %v568 = vsel %vm252, %v561, 0.0
          %v569 = vadd.f32 %v567, %v568
          %v570 = vsel %vm252, %v563, 0.0
          %v571 = vadd.f32 %v569, %v570
          %v572 = vsel %vm252, %v565, 0.0
          %v573 = vadd.f32 %v571, %v572
          %v574 = vsel %vm252, %v560, 0.0
          %v575 = vsel %vm252, %v562, 0.0
          %v576 = vadd.f32 %v574, %v575
          %v577 = vsel %vm252, %v564, 0.0
          %v578 = vadd.f32 %v576, %v577
          %v579 = vsel %vm252, %v566, 0.0
          %v580 = vadd.f32 %v578, %v579
          %s581 = sadd.s32 %s267, 6
          %s582 = smul.u32 %s581, 16
          %s583 = scalar_lea.vmem %s220, %s582
          %584 = vst.msk [vmem:[%s583] sm:$0xff] %vm252, %v573
          %585 = vst.msk [vmem:[%s583 + $0x8] sm:$0xff] %vm252, %v580
          %586 = vrot.lane.b32.xlu0 %v236, 121
          %v587 = vpop.permute.xlu0 %586
          %588 = vrot.lane.b32.xlu0 %v237, 121
          %v589 = vpop.permute.xlu0 %588
          %590 = vrot.lane.b32.xlu0 %v238, 121
          %v591 = vpop.permute.xlu0 %590
          %592 = vrot.lane.b32.xlu0 %v239, 121
          %v593 = vpop.permute.xlu0 %592
          %594 = vrot.lane.b32.xlu0 %v240, 121
          %v595 = vpop.permute.xlu0 %594
          %596 = vrot.lane.b32.xlu0 %v241, 121
          %v597 = vpop.permute.xlu0 %596
          %598 = vrot.lane.b32.xlu0 %v242, 121
          %v599 = vpop.permute.xlu0 %598
          %600 = vrot.lane.b32.xlu0 %v243, 121
          %v601 = vpop.permute.xlu0 %600
          %v610 = vmul.f32 %v221, %v587
          %v611 = vmul.f32 %v222, %v589
          %v612 = vmul.f32 %v223, %v591
          %v613 = vmul.f32 %v224, %v593
          %v614 = vmul.f32 %v225, %v595
          %v615 = vmul.f32 %v226, %v597
          %v616 = vmul.f32 %v227, %v599
          %v617 = vmul.f32 %v228, %v601
          %v618 = vsel %vm252, %v610, 0.0
          %v619 = vsel %vm252, %v612, 0.0
          %v620 = vadd.f32 %v618, %v619
          %v621 = vsel %vm252, %v614, 0.0
          %v622 = vadd.f32 %v620, %v621
          %v623 = vsel %vm252, %v616, 0.0
          %v624 = vadd.f32 %v622, %v623
          %v625 = vsel %vm252, %v611, 0.0
          %v626 = vsel %vm252, %v613, 0.0
          %v627 = vadd.f32 %v625, %v626
          %v628 = vsel %vm252, %v615, 0.0
          %v629 = vadd.f32 %v627, %v628
          %v630 = vsel %vm252, %v617, 0.0
          %v631 = vadd.f32 %v629, %v630
          %s632 = sadd.s32 %s267, 7
          %s633 = smul.u32 %s632, 16
          %s634 = scalar_lea.vmem %s220, %s633
          %635 = vst.msk [vmem:[%s634] sm:$0xff] %vm252, %v624
          %636 = vst.msk [vmem:[%s634 + $0x8] sm:$0xff] %vm252, %v631
          %637 = vrot.lane.b32.xlu0 %v236, 120
          %v638 = vpop.permute.xlu0 %637
          %639 = vrot.lane.b32.xlu0 %v237, 120
          %v640 = vpop.permute.xlu0 %639
          %641 = vrot.lane.b32.xlu0 %v238, 120
          %v642 = vpop.permute.xlu0 %641
          %643 = vrot.lane.b32.xlu0 %v239, 120
          %v644 = vpop.permute.xlu0 %643
          %645 = vrot.lane.b32.xlu0 %v240, 120
          %v646 = vpop.permute.xlu0 %645
          %647 = vrot.lane.b32.xlu0 %v241, 120
          %v648 = vpop.permute.xlu0 %647
          %649 = vrot.lane.b32.xlu0 %v242, 120
          %v650 = vpop.permute.xlu0 %649
          %651 = vrot.lane.b32.xlu0 %v243, 120
          %v652 = vpop.permute.xlu0 %651
          %v661 = vmul.f32 %v221, %v638
          %v662 = vmul.f32 %v222, %v640
          %v663 = vmul.f32 %v223, %v642
          %v664 = vmul.f32 %v224, %v644
          %v665 = vmul.f32 %v225, %v646
          %v666 = vmul.f32 %v226, %v648
          %v667 = vmul.f32 %v227, %v650
          %v668 = vmul.f32 %v228, %v652
          %v669 = vsel %vm252, %v661, 0.0
          %v670 = vsel %vm252, %v663, 0.0
          %v671 = vadd.f32 %v669, %v670
          %v672 = vsel %vm252, %v665, 0.0
          %v673 = vadd.f32 %v671, %v672
          %v674 = vsel %vm252, %v667, 0.0
          %v675 = vadd.f32 %v673, %v674
          %v676 = vsel %vm252, %v662, 0.0
          %v677 = vsel %vm252, %v664, 0.0
          %v678 = vadd.f32 %v676, %v677
          %v679 = vsel %vm252, %v666, 0.0
          %v680 = vadd.f32 %v678, %v679
          %v681 = vsel %vm252, %v668, 0.0
          %v682 = vadd.f32 %v680, %v681
          %s683 = sadd.s32 %s267, 8
          %s684 = smul.u32 %s683, 16
          %s685 = scalar_lea.vmem %s220, %s684
          %686 = vst.msk [vmem:[%s685] sm:$0xff] %vm252, %v675
          %687 = vst.msk [vmem:[%s685 + $0x8] sm:$0xff] %vm252, %v682
          %688 = vrot.lane.b32.xlu0 %v236, 119
          %v689 = vpop.permute.xlu0 %688
          %690 = vrot.lane.b32.xlu0 %v237, 119
          %v691 = vpop.permute.xlu0 %690
          %692 = vrot.lane.b32.xlu0 %v238, 119
          %v693 = vpop.permute.xlu0 %692
          %694 = vrot.lane.b32.xlu0 %v239, 119
          %v695 = vpop.permute.xlu0 %694
          %696 = vrot.lane.b32.xlu0 %v240, 119
          %v697 = vpop.permute.xlu0 %696
          %698 = vrot.lane.b32.xlu0 %v241, 119
          %v699 = vpop.permute.xlu0 %698
          %700 = vrot.lane.b32.xlu0 %v242, 119
          %v701 = vpop.permute.xlu0 %700
          %702 = vrot.lane.b32.xlu0 %v243, 119
          %v703 = vpop.permute.xlu0 %702
          %v712 = vmul.f32 %v221, %v689
          %v713 = vmul.f32 %v222, %v691
          %v714 = vmul.f32 %v223, %v693
          %v715 = vmul.f32 %v224, %v695
          %v716 = vmul.f32 %v225, %v697
          %v717 = vmul.f32 %v226, %v699
          %v718 = vmul.f32 %v227, %v701
          %v719 = vmul.f32 %v228, %v703
          %v720 = vsel %vm252, %v712, 0.0
          %v721 = vsel %vm252, %v714, 0.0
          %v722 = vadd.f32 %v720, %v721
          %v723 = vsel %vm252, %v716, 0.0
          %v724 = vadd.f32 %v722, %v723
          %v725 = vsel %vm252, %v718, 0.0
          %v726 = vadd.f32 %v724, %v725
          %v727 = vsel %vm252, %v713, 0.0
          %v728 = vsel %vm252, %v715, 0.0
          %v729 = vadd.f32 %v727, %v728
          %v730 = vsel %vm252, %v717, 0.0
          %v731 = vadd.f32 %v729, %v730
          %v732 = vsel %vm252, %v719, 0.0
          %v733 = vadd.f32 %v731, %v732
          %s734 = sadd.s32 %s267, 9
          %s735 = smul.u32 %s734, 16
          %s736 = scalar_lea.vmem %s220, %s735
          %737 = vst.msk [vmem:[%s736] sm:$0xff] %vm252, %v726
          %738 = vst.msk [vmem:[%s736 + $0x8] sm:$0xff] %vm252, %v733
          %739 = vrot.lane.b32.xlu0 %v236, 118
          %v740 = vpop.permute.xlu0 %739
          %741 = vrot.lane.b32.xlu0 %v237, 118
          %v742 = vpop.permute.xlu0 %741
          %743 = vrot.lane.b32.xlu0 %v238, 118
          %v744 = vpop.permute.xlu0 %743
          %745 = vrot.lane.b32.xlu0 %v239, 118
          %v746 = vpop.permute.xlu0 %745
          %747 = vrot.lane.b32.xlu0 %v240, 118
          %v748 = vpop.permute.xlu0 %747
          %749 = vrot.lane.b32.xlu0 %v241, 118
          %v750 = vpop.permute.xlu0 %749
          %751 = vrot.lane.b32.xlu0 %v242, 118
          %v752 = vpop.permute.xlu0 %751
          %753 = vrot.lane.b32.xlu0 %v243, 118
          %v754 = vpop.permute.xlu0 %753
          %v763 = vmul.f32 %v221, %v740
          %v764 = vmul.f32 %v222, %v742
          %v765 = vmul.f32 %v223, %v744
          %v766 = vmul.f32 %v224, %v746
          %v767 = vmul.f32 %v225, %v748
          %v768 = vmul.f32 %v226, %v750
          %v769 = vmul.f32 %v227, %v752
          %v770 = vmul.f32 %v228, %v754
          %v771 = vsel %vm252, %v763, 0.0
          %v772 = vsel %vm252, %v765, 0.0
          %v773 = vadd.f32 %v771, %v772
          %v774 = vsel %vm252, %v767, 0.0
          %v775 = vadd.f32 %v773, %v774
          %v776 = vsel %vm252, %v769, 0.0
          %v777 = vadd.f32 %v775, %v776
          %v778 = vsel %vm252, %v764, 0.0
          %v779 = vsel %vm252, %v766, 0.0
          %v780 = vadd.f32 %v778, %v779
          %v781 = vsel %vm252, %v768, 0.0
          %v782 = vadd.f32 %v780, %v781
          %v783 = vsel %vm252, %v770, 0.0
          %v784 = vadd.f32 %v782, %v783
          %s785 = sadd.s32 %s267, 10
          %s786 = smul.u32 %s785, 16
          %s787 = scalar_lea.vmem %s220, %s786
          %788 = vst.msk [vmem:[%s787] sm:$0xff] %vm252, %v777
          %789 = vst.msk [vmem:[%s787 + $0x8] sm:$0xff] %vm252, %v784
          %790 = vrot.lane.b32.xlu0 %v236, 117
          %v791 = vpop.permute.xlu0 %790
          %792 = vrot.lane.b32.xlu0 %v237, 117
          %v793 = vpop.permute.xlu0 %792
          %794 = vrot.lane.b32.xlu0 %v238, 117
          %v795 = vpop.permute.xlu0 %794
          %796 = vrot.lane.b32.xlu0 %v239, 117
          %v797 = vpop.permute.xlu0 %796
          %798 = vrot.lane.b32.xlu0 %v240, 117
          %v799 = vpop.permute.xlu0 %798
          %800 = vrot.lane.b32.xlu0 %v241, 117
          %v801 = vpop.permute.xlu0 %800
          %802 = vrot.lane.b32.xlu0 %v242, 117
          %v803 = vpop.permute.xlu0 %802
          %804 = vrot.lane.b32.xlu0 %v243, 117
          %v805 = vpop.permute.xlu0 %804
          %v814 = vmul.f32 %v221, %v791
          %v815 = vmul.f32 %v222, %v793
          %v816 = vmul.f32 %v223, %v795
          %v817 = vmul.f32 %v224, %v797
          %v818 = vmul.f32 %v225, %v799
          %v819 = vmul.f32 %v226, %v801
          %v820 = vmul.f32 %v227, %v803
          %v821 = vmul.f32 %v228, %v805
          %v822 = vsel %vm252, %v814, 0.0
          %v823 = vsel %vm252, %v816, 0.0
          %v824 = vadd.f32 %v822, %v823
          %v825 = vsel %vm252, %v818, 0.0
          %v826 = vadd.f32 %v824, %v825
          %v827 = vsel %vm252, %v820, 0.0
          %v828 = vadd.f32 %v826, %v827
          %v829 = vsel %vm252, %v815, 0.0
          %v830 = vsel %vm252, %v817, 0.0
          %v831 = vadd.f32 %v829, %v830
          %v832 = vsel %vm252, %v819, 0.0
          %v833 = vadd.f32 %v831, %v832
          %v834 = vsel %vm252, %v821, 0.0
          %v835 = vadd.f32 %v833, %v834
          %s836 = sadd.s32 %s267, 11
          %s837 = smul.u32 %s836, 16
          %s838 = scalar_lea.vmem %s220, %s837
          %839 = vst.msk [vmem:[%s838] sm:$0xff] %vm252, %v828
          %840 = vst.msk [vmem:[%s838 + $0x8] sm:$0xff] %vm252, %v835
          %841 = vrot.lane.b32.xlu0 %v236, 116
          %v842 = vpop.permute.xlu0 %841
          %843 = vrot.lane.b32.xlu0 %v237, 116
          %v844 = vpop.permute.xlu0 %843
          %845 = vrot.lane.b32.xlu0 %v238, 116
          %v846 = vpop.permute.xlu0 %845
          %847 = vrot.lane.b32.xlu0 %v239, 116
          %v848 = vpop.permute.xlu0 %847
          %849 = vrot.lane.b32.xlu0 %v240, 116
          %v850 = vpop.permute.xlu0 %849
          %851 = vrot.lane.b32.xlu0 %v241, 116
          %v852 = vpop.permute.xlu0 %851
          %853 = vrot.lane.b32.xlu0 %v242, 116
          %v854 = vpop.permute.xlu0 %853
          %855 = vrot.lane.b32.xlu0 %v243, 116
          %v856 = vpop.permute.xlu0 %855
          %v865 = vmul.f32 %v221, %v842
          %v866 = vmul.f32 %v222, %v844
          %v867 = vmul.f32 %v223, %v846
          %v868 = vmul.f32 %v224, %v848
          %v869 = vmul.f32 %v225, %v850
          %v870 = vmul.f32 %v226, %v852
          %v871 = vmul.f32 %v227, %v854
          %v872 = vmul.f32 %v228, %v856
          %v873 = vsel %vm252, %v865, 0.0
          %v874 = vsel %vm252, %v867, 0.0
          %v875 = vadd.f32 %v873, %v874
          %v876 = vsel %vm252, %v869, 0.0
          %v877 = vadd.f32 %v875, %v876
          %v878 = vsel %vm252, %v871, 0.0
          %v879 = vadd.f32 %v877, %v878
          %v880 = vsel %vm252, %v866, 0.0
          %v881 = vsel %vm252, %v868, 0.0
          %v882 = vadd.f32 %v880, %v881
          %v883 = vsel %vm252, %v870, 0.0
          %v884 = vadd.f32 %v882, %v883
          %v885 = vsel %vm252, %v872, 0.0
          %v886 = vadd.f32 %v884, %v885
          %s887 = sadd.s32 %s267, 12
          %s888 = smul.u32 %s887, 16
          %s889 = scalar_lea.vmem %s220, %s888
          %890 = vst.msk [vmem:[%s889] sm:$0xff] %vm252, %v879
          %891 = vst.msk [vmem:[%s889 + $0x8] sm:$0xff] %vm252, %v886
          %892 = vrot.lane.b32.xlu0 %v236, 115
          %v893 = vpop.permute.xlu0 %892
          %894 = vrot.lane.b32.xlu0 %v237, 115
          %v895 = vpop.permute.xlu0 %894
          %896 = vrot.lane.b32.xlu0 %v238, 115
          %v897 = vpop.permute.xlu0 %896
          %898 = vrot.lane.b32.xlu0 %v239, 115
          %v899 = vpop.permute.xlu0 %898
          %900 = vrot.lane.b32.xlu0 %v240, 115
          %v901 = vpop.permute.xlu0 %900
          %902 = vrot.lane.b32.xlu0 %v241, 115
          %v903 = vpop.permute.xlu0 %902
          %904 = vrot.lane.b32.xlu0 %v242, 115
          %v905 = vpop.permute.xlu0 %904
          %906 = vrot.lane.b32.xlu0 %v243, 115
          %v907 = vpop.permute.xlu0 %906
          %v916 = vmul.f32 %v221, %v893
          %v917 = vmul.f32 %v222, %v895
          %v918 = vmul.f32 %v223, %v897
          %v919 = vmul.f32 %v224, %v899
          %v920 = vmul.f32 %v225, %v901
          %v921 = vmul.f32 %v226, %v903
          %v922 = vmul.f32 %v227, %v905
          %v923 = vmul.f32 %v228, %v907
          %v924 = vsel %vm252, %v916, 0.0
          %v925 = vsel %vm252, %v918, 0.0
          %v926 = vadd.f32 %v924, %v925
          %v927 = vsel %vm252, %v920, 0.0
          %v928 = vadd.f32 %v926, %v927
          %v929 = vsel %vm252, %v922, 0.0
          %v930 = vadd.f32 %v928, %v929
          %v931 = vsel %vm252, %v917, 0.0
          %v932 = vsel %vm252, %v919, 0.0
          %v933 = vadd.f32 %v931, %v932
          %v934 = vsel %vm252, %v921, 0.0
          %v935 = vadd.f32 %v933, %v934
          %v936 = vsel %vm252, %v923, 0.0
          %v937 = vadd.f32 %v935, %v936
          %s938 = sadd.s32 %s267, 13
          %s939 = smul.u32 %s938, 16
          %s940 = scalar_lea.vmem %s220, %s939
          %941 = vst.msk [vmem:[%s940] sm:$0xff] %vm252, %v930
          %942 = vst.msk [vmem:[%s940 + $0x8] sm:$0xff] %vm252, %v937
          %943 = vrot.lane.b32.xlu0 %v236, 114
          %v944 = vpop.permute.xlu0 %943
          %945 = vrot.lane.b32.xlu0 %v237, 114
          %v946 = vpop.permute.xlu0 %945
          %947 = vrot.lane.b32.xlu0 %v238, 114
          %v948 = vpop.permute.xlu0 %947
          %949 = vrot.lane.b32.xlu0 %v239, 114
          %v950 = vpop.permute.xlu0 %949
          %951 = vrot.lane.b32.xlu0 %v240, 114
          %v952 = vpop.permute.xlu0 %951
          %953 = vrot.lane.b32.xlu0 %v241, 114
          %v954 = vpop.permute.xlu0 %953
          %955 = vrot.lane.b32.xlu0 %v242, 114
          %v956 = vpop.permute.xlu0 %955
          %957 = vrot.lane.b32.xlu0 %v243, 114
          %v958 = vpop.permute.xlu0 %957
          %v967 = vmul.f32 %v221, %v944
          %v968 = vmul.f32 %v222, %v946
          %v969 = vmul.f32 %v223, %v948
          %v970 = vmul.f32 %v224, %v950
          %v971 = vmul.f32 %v225, %v952
          %v972 = vmul.f32 %v226, %v954
          %v973 = vmul.f32 %v227, %v956
          %v974 = vmul.f32 %v228, %v958
          %v975 = vsel %vm252, %v967, 0.0
          %v976 = vsel %vm252, %v969, 0.0
          %v977 = vadd.f32 %v975, %v976
          %v978 = vsel %vm252, %v971, 0.0
          %v979 = vadd.f32 %v977, %v978
          %v980 = vsel %vm252, %v973, 0.0
          %v981 = vadd.f32 %v979, %v980
          %v982 = vsel %vm252, %v968, 0.0
          %v983 = vsel %vm252, %v970, 0.0
          %v984 = vadd.f32 %v982, %v983
          %v985 = vsel %vm252, %v972, 0.0
          %v986 = vadd.f32 %v984, %v985
          %v987 = vsel %vm252, %v974, 0.0
          %v988 = vadd.f32 %v986, %v987
          %s989 = sadd.s32 %s267, 14
          %s990 = smul.u32 %s989, 16
          %s991 = scalar_lea.vmem %s220, %s990
          %992 = vst.msk [vmem:[%s991] sm:$0xff] %vm252, %v981
          %993 = vst.msk [vmem:[%s991 + $0x8] sm:$0xff] %vm252, %v988
          %994 = vrot.lane.b32.xlu0 %v236, 113
          %v995 = vpop.permute.xlu0 %994
          %996 = vrot.lane.b32.xlu0 %v237, 113
          %v997 = vpop.permute.xlu0 %996
          %998 = vrot.lane.b32.xlu0 %v238, 113
          %v999 = vpop.permute.xlu0 %998
          %1000 = vrot.lane.b32.xlu0 %v239, 113
          %v1001 = vpop.permute.xlu0 %1000
          %1002 = vrot.lane.b32.xlu0 %v240, 113
          %v1003 = vpop.permute.xlu0 %1002
          %1004 = vrot.lane.b32.xlu0 %v241, 113
          %v1005 = vpop.permute.xlu0 %1004
          %1006 = vrot.lane.b32.xlu0 %v242, 113
          %v1007 = vpop.permute.xlu0 %1006
          %1008 = vrot.lane.b32.xlu0 %v243, 113
          %v1009 = vpop.permute.xlu0 %1008
          %v1018 = vmul.f32 %v221, %v995
          %v1019 = vmul.f32 %v222, %v997
          %v1020 = vmul.f32 %v223, %v999
          %v1021 = vmul.f32 %v224, %v1001
          %v1022 = vmul.f32 %v225, %v1003
          %v1023 = vmul.f32 %v226, %v1005
          %v1024 = vmul.f32 %v227, %v1007
          %v1025 = vmul.f32 %v228, %v1009
          %v1026 = vsel %vm252, %v1018, 0.0
          %v1027 = vsel %vm252, %v1020, 0.0
          %v1028 = vadd.f32 %v1026, %v1027
          %v1029 = vsel %vm252, %v1022, 0.0
          %v1030 = vadd.f32 %v1028, %v1029
          %v1031 = vsel %vm252, %v1024, 0.0
          %v1032 = vadd.f32 %v1030, %v1031
          %v1033 = vsel %vm252, %v1019, 0.0
          %v1034 = vsel %vm252, %v1021, 0.0
          %v1035 = vadd.f32 %v1033, %v1034
          %v1036 = vsel %vm252, %v1023, 0.0
          %v1037 = vadd.f32 %v1035, %v1036
          %v1038 = vsel %vm252, %v1025, 0.0
          %v1039 = vadd.f32 %v1037, %v1038
          %s1040 = sadd.s32 %s267, 15
          %s1041 = smul.u32 %s1040, 16
          %s1042 = scalar_lea.vmem %s220, %s1041
          %1043 = vst.msk [vmem:[%s1042] sm:$0xff] %vm252, %v1032
          %1044 = vst.msk [vmem:[%s1042 + $0x8] sm:$0xff] %vm252, %v1039
          %1045 = vrot.lane.b32.xlu0 %v236, 112
          %v1046 = vpop.permute.xlu0 %1045
          %1047 = vrot.lane.b32.xlu0 %v237, 112
          %v1048 = vpop.permute.xlu0 %1047
          %1049 = vrot.lane.b32.xlu0 %v238, 112
          %v1050 = vpop.permute.xlu0 %1049
          %1051 = vrot.lane.b32.xlu0 %v239, 112
          %v1052 = vpop.permute.xlu0 %1051
          %1053 = vrot.lane.b32.xlu0 %v240, 112
          %v1054 = vpop.permute.xlu0 %1053
          %1055 = vrot.lane.b32.xlu0 %v241, 112
          %v1056 = vpop.permute.xlu0 %1055
          %1057 = vrot.lane.b32.xlu0 %v242, 112
          %v1058 = vpop.permute.xlu0 %1057
          %1059 = vrot.lane.b32.xlu0 %v243, 112
          %v1060 = vpop.permute.xlu0 %1059
          %v1069 = vmul.f32 %v221, %v1046
          %v1070 = vmul.f32 %v222, %v1048
          %v1071 = vmul.f32 %v223, %v1050
          %v1072 = vmul.f32 %v224, %v1052
          %v1073 = vmul.f32 %v225, %v1054
          %v1074 = vmul.f32 %v226, %v1056
          %v1075 = vmul.f32 %v227, %v1058
          %v1076 = vmul.f32 %v228, %v1060
          %v1077 = vsel %vm252, %v1069, 0.0
          %v1078 = vsel %vm252, %v1071, 0.0
          %v1079 = vadd.f32 %v1077, %v1078
          %v1080 = vsel %vm252, %v1073, 0.0
          %v1081 = vadd.f32 %v1079, %v1080
          %v1082 = vsel %vm252, %v1075, 0.0
          %v1083 = vadd.f32 %v1081, %v1082
          %v1084 = vsel %vm252, %v1070, 0.0
          %v1085 = vsel %vm252, %v1072, 0.0
          %v1086 = vadd.f32 %v1084, %v1085
          %v1087 = vsel %vm252, %v1074, 0.0
          %v1088 = vadd.f32 %v1086, %v1087
          %v1089 = vsel %vm252, %v1076, 0.0
          %v1090 = vadd.f32 %v1088, %v1089
          %s1091 = sadd.s32 %s267, 16
          %s1092 = smul.u32 %s1091, 16
          %s1093 = scalar_lea.vmem %s220, %s1092
          %1094 = vst.msk [vmem:[%s1093] sm:$0xff] %vm252, %v1083
          %1095 = vst.msk [vmem:[%s1093 + $0x8] sm:$0xff] %vm252, %v1090
          %1096 = vrot.lane.b32.xlu0 %v236, 111
          %v1097 = vpop.permute.xlu0 %1096
          %1098 = vrot.lane.b32.xlu0 %v237, 111
          %v1099 = vpop.permute.xlu0 %1098
          %1100 = vrot.lane.b32.xlu0 %v238, 111
          %v1101 = vpop.permute.xlu0 %1100
          %1102 = vrot.lane.b32.xlu0 %v239, 111
          %v1103 = vpop.permute.xlu0 %1102
          %1104 = vrot.lane.b32.xlu0 %v240, 111
          %v1105 = vpop.permute.xlu0 %1104
          %1106 = vrot.lane.b32.xlu0 %v241, 111
          %v1107 = vpop.permute.xlu0 %1106
          %1108 = vrot.lane.b32.xlu0 %v242, 111
          %v1109 = vpop.permute.xlu0 %1108
          %1110 = vrot.lane.b32.xlu0 %v243, 111
          %v1111 = vpop.permute.xlu0 %1110
          %v1120 = vmul.f32 %v221, %v1097
          %v1121 = vmul.f32 %v222, %v1099
          %v1122 = vmul.f32 %v223, %v1101
          %v1123 = vmul.f32 %v224, %v1103
          %v1124 = vmul.f32 %v225, %v1105
          %v1125 = vmul.f32 %v226, %v1107
          %v1126 = vmul.f32 %v227, %v1109
          %v1127 = vmul.f32 %v228, %v1111
          %v1128 = vsel %vm252, %v1120, 0.0
          %v1129 = vsel %vm252, %v1122, 0.0
          %v1130 = vadd.f32 %v1128, %v1129
          %v1131 = vsel %vm252, %v1124, 0.0
          %v1132 = vadd.f32 %v1130, %v1131
          %v1133 = vsel %vm252, %v1126, 0.0
          %v1134 = vadd.f32 %v1132, %v1133
          %v1135 = vsel %vm252, %v1121, 0.0
          %v1136 = vsel %vm252, %v1123, 0.0
          %v1137 = vadd.f32 %v1135, %v1136
          %v1138 = vsel %vm252, %v1125, 0.0
          %v1139 = vadd.f32 %v1137, %v1138
          %v1140 = vsel %vm252, %v1127, 0.0
          %v1141 = vadd.f32 %v1139, %v1140
          %s1142 = sadd.s32 %s267, 17
          %s1143 = smul.u32 %s1142, 16
          %s1144 = scalar_lea.vmem %s220, %s1143
          %1145 = vst.msk [vmem:[%s1144] sm:$0xff] %vm252, %v1134
          %1146 = vst.msk [vmem:[%s1144 + $0x8] sm:$0xff] %vm252, %v1141
          %1147 = vrot.lane.b32.xlu0 %v236, 110
          %v1148 = vpop.permute.xlu0 %1147
          %1149 = vrot.lane.b32.xlu0 %v237, 110
          %v1150 = vpop.permute.xlu0 %1149
          %1151 = vrot.lane.b32.xlu0 %v238, 110
          %v1152 = vpop.permute.xlu0 %1151
          %1153 = vrot.lane.b32.xlu0 %v239, 110
          %v1154 = vpop.permute.xlu0 %1153
          %1155 = vrot.lane.b32.xlu0 %v240, 110
          %v1156 = vpop.permute.xlu0 %1155
          %1157 = vrot.lane.b32.xlu0 %v241, 110
          %v1158 = vpop.permute.xlu0 %1157
          %1159 = vrot.lane.b32.xlu0 %v242, 110
          %v1160 = vpop.permute.xlu0 %1159
          %1161 = vrot.lane.b32.xlu0 %v243, 110
          %v1162 = vpop.permute.xlu0 %1161
          %v1171 = vmul.f32 %v221, %v1148
          %v1172 = vmul.f32 %v222, %v1150
          %v1173 = vmul.f32 %v223, %v1152
          %v1174 = vmul.f32 %v224, %v1154
          %v1175 = vmul.f32 %v225, %v1156
          %v1176 = vmul.f32 %v226, %v1158
          %v1177 = vmul.f32 %v227, %v1160
          %v1178 = vmul.f32 %v228, %v1162
          %v1179 = vsel %vm252, %v1171, 0.0
          %v1180 = vsel %vm252, %v1173, 0.0
          %v1181 = vadd.f32 %v1179, %v1180
          %v1182 = vsel %vm252, %v1175, 0.0
          %v1183 = vadd.f32 %v1181, %v1182
          %v1184 = vsel %vm252, %v1177, 0.0
          %v1185 = vadd.f32 %v1183, %v1184
          %v1186 = vsel %vm252, %v1172, 0.0
          %v1187 = vsel %vm252, %v1174, 0.0
          %v1188 = vadd.f32 %v1186, %v1187
          %v1189 = vsel %vm252, %v1176, 0.0
          %v1190 = vadd.f32 %v1188, %v1189
          %v1191 = vsel %vm252, %v1178, 0.0
          %v1192 = vadd.f32 %v1190, %v1191
          %s1193 = sadd.s32 %s267, 18
          %s1194 = smul.u32 %s1193, 16
          %s1195 = scalar_lea.vmem %s220, %s1194
          %1196 = vst.msk [vmem:[%s1195] sm:$0xff] %vm252, %v1185
          %1197 = vst.msk [vmem:[%s1195 + $0x8] sm:$0xff] %vm252, %v1192
          %1198 = vrot.lane.b32.xlu0 %v236, 109
          %v1199 = vpop.permute.xlu0 %1198
          %1200 = vrot.lane.b32.xlu0 %v237, 109
          %v1201 = vpop.permute.xlu0 %1200
          %1202 = vrot.lane.b32.xlu0 %v238, 109
          %v1203 = vpop.permute.xlu0 %1202
          %1204 = vrot.lane.b32.xlu0 %v239, 109
          %v1205 = vpop.permute.xlu0 %1204
          %1206 = vrot.lane.b32.xlu0 %v240, 109
          %v1207 = vpop.permute.xlu0 %1206
          %1208 = vrot.lane.b32.xlu0 %v241, 109
          %v1209 = vpop.permute.xlu0 %1208
          %1210 = vrot.lane.b32.xlu0 %v242, 109
          %v1211 = vpop.permute.xlu0 %1210
          %1212 = vrot.lane.b32.xlu0 %v243, 109
          %v1213 = vpop.permute.xlu0 %1212
          %v1222 = vmul.f32 %v221, %v1199
          %v1223 = vmul.f32 %v222, %v1201
          %v1224 = vmul.f32 %v223, %v1203
          %v1225 = vmul.f32 %v224, %v1205
          %v1226 = vmul.f32 %v225, %v1207
          %v1227 = vmul.f32 %v226, %v1209
          %v1228 = vmul.f32 %v227, %v1211
          %v1229 = vmul.f32 %v228, %v1213
          %v1230 = vsel %vm252, %v1222, 0.0
          %v1231 = vsel %vm252, %v1224, 0.0
          %v1232 = vadd.f32 %v1230, %v1231
          %v1233 = vsel %vm252, %v1226, 0.0
          %v1234 = vadd.f32 %v1232, %v1233
          %v1235 = vsel %vm252, %v1228, 0.0
          %v1236 = vadd.f32 %v1234, %v1235
          %v1237 = vsel %vm252, %v1223, 0.0
          %v1238 = vsel %vm252, %v1225, 0.0
          %v1239 = vadd.f32 %v1237, %v1238
          %v1240 = vsel %vm252, %v1227, 0.0
          %v1241 = vadd.f32 %v1239, %v1240
          %v1242 = vsel %vm252, %v1229, 0.0
          %v1243 = vadd.f32 %v1241, %v1242
          %s1244 = sadd.s32 %s267, 19
          %s1245 = smul.u32 %s1244, 16
          %s1246 = scalar_lea.vmem %s220, %s1245
          %1247 = vst.msk [vmem:[%s1246] sm:$0xff] %vm252, %v1236
          %1248 = vst.msk [vmem:[%s1246 + $0x8] sm:$0xff] %vm252, %v1243
          %1249 = vrot.lane.b32.xlu0 %v236, 108
          %v1250 = vpop.permute.xlu0 %1249
          %1251 = vrot.lane.b32.xlu0 %v237, 108
          %v1252 = vpop.permute.xlu0 %1251
          %1253 = vrot.lane.b32.xlu0 %v238, 108
          %v1254 = vpop.permute.xlu0 %1253
          %1255 = vrot.lane.b32.xlu0 %v239, 108
          %v1256 = vpop.permute.xlu0 %1255
          %1257 = vrot.lane.b32.xlu0 %v240, 108
          %v1258 = vpop.permute.xlu0 %1257
          %1259 = vrot.lane.b32.xlu0 %v241, 108
          %v1260 = vpop.permute.xlu0 %1259
          %1261 = vrot.lane.b32.xlu0 %v242, 108
          %v1262 = vpop.permute.xlu0 %1261
          %1263 = vrot.lane.b32.xlu0 %v243, 108
          %v1264 = vpop.permute.xlu0 %1263
          %v1273 = vmul.f32 %v221, %v1250
          %v1274 = vmul.f32 %v222, %v1252
          %v1275 = vmul.f32 %v223, %v1254
          %v1276 = vmul.f32 %v224, %v1256
          %v1277 = vmul.f32 %v225, %v1258
          %v1278 = vmul.f32 %v226, %v1260
          %v1279 = vmul.f32 %v227, %v1262
          %v1280 = vmul.f32 %v228, %v1264
          %v1281 = vsel %vm252, %v1273, 0.0
          %v1282 = vsel %vm252, %v1275, 0.0
          %v1283 = vadd.f32 %v1281, %v1282
          %v1284 = vsel %vm252, %v1277, 0.0
          %v1285 = vadd.f32 %v1283, %v1284
          %v1286 = vsel %vm252, %v1279, 0.0
          %v1287 = vadd.f32 %v1285, %v1286
          %v1288 = vsel %vm252, %v1274, 0.0
          %v1289 = vsel %vm252, %v1276, 0.0
          %v1290 = vadd.f32 %v1288, %v1289
          %v1291 = vsel %vm252, %v1278, 0.0
          %v1292 = vadd.f32 %v1290, %v1291
          %v1293 = vsel %vm252, %v1280, 0.0
          %v1294 = vadd.f32 %v1292, %v1293
          %s1295 = sadd.s32 %s267, 20
          %s1296 = smul.u32 %s1295, 16
          %s1297 = scalar_lea.vmem %s220, %s1296
          %1298 = vst.msk [vmem:[%s1297] sm:$0xff] %vm252, %v1287
          %1299 = vst.msk [vmem:[%s1297 + $0x8] sm:$0xff] %vm252, %v1294
        $region37: #{correlation.1} parent=27 // loop_footer
          %s234 = sadd.s32 1, %s230
        $region38: #{correlation.1} parent=27 // loop_footer_branch
          %229 = sbr.rel target = $region34
        $region39: #{correlation.1} parent=27 // loop_exit
          _
        %p1300 = scmp.lt.s32.totalorder %s20, 1
        %s1301 = scalar_select %p1300, %s20, 1
        %s1302 = smul.addr %s1301, 882
        %s1303 = smul.addr %s1302, 8
        %s1304 = scalar_lea.vmem %s2, %s1303
        // Predicated region
        $region40: #{correlation.1} parent=27 // pred_check
          %p1305 = pneg %p102
        $region41: #{correlation.1} parent=27 // pred_check_branch
          %1307 = sbr.rel (%p1305) target = $region43
        $region42: #{correlation.1} parent=27 // pred_region
          _
        $region43: #{correlation.1} parent=27 // pred_fallthru
          _
      $region28: #{correlation.1} parent=5 // pred_fallthru
        _
      %p1308 = scmp.le.s32.totalorder 2, %s11
      // Predicated region
      $region44: #{correlation.1} parent=5 // pred_check
        %p1309 = pneg %p1308
      $region45: #{correlation.1} parent=5 // pred_check_branch
        %1311 = sbr.rel (%p1309) target = $region47
      $region46: #{correlation.1} parent=5 // pred_region
        %s1312 = ssub.s32 %s11, 2
        // Predicated region
        $region48: #{correlation.1} parent=46 // pred_check
          %p1313 = pneg %p108
        $region49: #{correlation.1} parent=46 // pred_check_branch
          %1315 = sbr.rel (%p1313) target = $region51
        $region50: #{correlation.1} parent=46 // pred_region
          %p1316 = scmp.lt.s32.totalorder %s22, 1
          %s1317 = scalar_select %p1316, %s22, 1
          %s1318 = smul.addr %s1317, 882
          %s1319 = smul.addr %s1318, 8
          %s1320 = scalar_lea.vmem %s2, %s1319
        $region51: #{correlation.1} parent=46 // pred_fallthru
          _
      $region47: #{correlation.1} parent=5 // pred_fallthru
        _
    $region6: #{correlation.1} parent=1 // loop_footer
      %s15 = sadd.s32 1, %s11
    $region7: #{correlation.1} parent=1 // loop_footer_branch
      %10 = sbr.rel target = $region3
    $region8: #{correlation.1} parent=1 // loop_exit
      _
    %1321 = vsyncpa [#allocation3], 1
    %s1322 = scalar_lea.sflag [#allocation3], 1
    %1323 = vsyncpa %s1322, 1

</llo_original>
